<compile_context>
chip_gen: v5e
topology: v5e:2x2
jax: 0.10.0
libtpu: 0.0.40
codegen_flags: <defaults>
</compile_context>

<pallas_src>
import functools

import jax
import jax.numpy as jnp
from jax.experimental import pallas as pl
from jax.experimental.pallas import tpu as pltpu

EPS = 1e-5
# MXU operand dtype (accumulation is always f32).  bf16 is the right operand choice on
# v5e/v6e/v7x (no int8/fp8 detour); set to jnp.float32 for bit-faithful f32 matmuls.
MATMUL_DTYPE = jnp.bfloat16


def bottleneck_kernel(i_ref, x_ref, w1_ref, g1_ref, b1_ref,
                      w2_ref, g2_ref, b2_ref, w3_ref, g3_ref, b3_ref,
                      redc_ref, bcc_ref, redo_ref, bco_ref,
                      out_ref, p_ref, *, H, W, mm_dtype):
    f32 = jnp.float32
    NH = x_ref.shape[0]          # N*H slab rows
    M = NH * W                   # per-channel element count for batch statistics
    ones_rows = jnp.ones((1, NH), f32)

    def bn(h, g_ref, b_ref, red_ref, bcast_ref, relu):
        """Training-mode BatchNorm on a (NH, W*C) slab; stats & broadcast on the MXU."""
        red = red_ref[...]                                               # (W*C, C)
        s1 = jnp.dot(ones_rows, h, preferred_element_type=f32)           # (1, W*C) col sums
        s2 = jnp.dot(ones_rows, h * h, preferred_element_type=f32)       # (1, W*C)
        sum_c = jnp.dot(s1, red, preferred_element_type=f32)             # (1, C)
        sumsq_c = jnp.dot(s2, red, preferred_element_type=f32)           # (1, C)
        mean = sum_c / M
        var = sumsq_c / M - mean * mean                                  # biased batch var
        scale_c = g_ref[...] * jax.lax.rsqrt(var + EPS)                  # EUP rsqrt
        shift_c = b_ref[...] - mean * scale_c
        scale = jnp.dot(scale_c, bcast_ref[...], preferred_element_type=f32)   # (1, W*C)
        shift = jnp.dot(shift_c, bcast_ref[...], preferred_element_type=f32)
        y = h * scale + shift
        return jnp.maximum(y, 0.0) if relu else y

    # ---- conv1 (1x1) as a block-diagonal matmul -> bn1 -> relu -----------------------
    h1 = jnp.dot(x_ref[...].astype(mm_dtype), w1_ref[...],
                 preferred_element_type=f32)                             # (NH, W*C)
    a1 = bn(h1, g1_ref, b1_ref, redc_ref, bcc_ref, relu=True)

    # ---- conv2 (3x3, stride 1, pad 1) as ONE banded matmul ---------------------------
    # dj taps live in the banded weight; di = +-1 taps are row-shifted reads of a
    # row-padded scratch, select-masked on image-boundary rows so uninitialized halo
    # rows / neighbouring-image rows never reach the arithmetic.
    p_ref[8:8 + NH, :] = a1                        # 8-aligned, full-width store
    ii = i_ref[...]                                # (NH, 1) int32: slab row -> image row i
    up = jnp.where(ii >= 1, p_ref[7:7 + NH, :], 0.0)         # a1 at image row i-1
    dn = jnp.where(ii <= H - 2, p_ref[9:9 + NH, :], 0.0)     # a1 at image row i+1
    cols = jnp.concatenate([up, a1, dn], axis=1).astype(mm_dtype)        # (NH, 3*W*C)
    h2 = jnp.dot(cols, w2_ref[...], preferred_element_type=f32)          # (NH, W*C)
    a2 = bn(h2, g2_ref, b2_ref, redc_ref, bcc_ref, relu=True)

    # ---- conv3 (1x1, x4 expansion) -> bn3 -> + identity -> relu (fused) --------------
    h3 = jnp.dot(a2.astype(mm_dtype), w3_ref[...],
                 preferred_element_type=f32)                             # (NH, W*Cout)
    h3 = bn(h3, g3_ref, b3_ref, redo_ref, bco_ref, relu=False)
    # Late re-read of x (identity shortcut, same slab layout): no full-kernel live range.
    out_ref[...] = jnp.maximum(h3 + x_ref[...], 0.0)


@functools.partial(jax.jit, static_argnames=("mm_dtype",))
def bottleneck_forward(x_nchw, params, mm_dtype=MATMUL_DTYPE):
    """BottleNeck forward (stride=1, shortcut=None -> identity residual) via Pallas."""
    w1, g1, b1, w2, g2, b2, w3, g3, b3 = params
    N, Cin, H, W = x_nchw.shape
    C = w1.shape[1]
    Cout = w3.shape[1]
    assert Cin == Cout, (
        "identity-shortcut BottleNeck requires in_channels == out_channels * 4 "
        "(stride>1 / learned shortcut path not implemented)")

    NH = N * H
    f32 = jnp.float32

    # ---- wrapper-side layout / weight glue (XLA, not the hot path) -------------------
    # slab layout: rows = (n, i), lanes = (j, channel)
    x_slab = jnp.transpose(x_nchw, (0, 2, 3, 1)).reshape(NH, W * Cin)

    eye_w = jnp.eye(W, dtype=f32)
    w1bd = jnp.kron(eye_w, w1).astype(mm_dtype)          # (W*Cin, W*C)  block-diagonal
    w3bd = jnp.kron(eye_w, w3).astype(mm_dtype)          # (W*C, W*Cout) block-diagonal
    # Banded conv2 weight: row block t encodes the di = t-1 tap; inside a block the
    # dj = -1/0/+1 taps sit on kron(eye(W, k=-dj), w2[di+1, dj+1]) (sub/super)diagonals,
    # so column zero-padding is structural (no masks needed for dj).
    bands = []
    for di in (-1, 0, 1):
        bt = sum(jnp.kron(jnp.eye(W, k=-dj, dtype=f32), w2[di + 1, dj + 1])
                 for dj in (-1, 0, 1))
        bands.append(bt)
    w2band = jnp.concatenate(bands, axis=0).astype(mm_dtype)   # (3*W*C, W*C)

    # Per-channel fold / broadcast matrices for the MXU batch-norm statistics.
    red_c = jnp.kron(jnp.ones((W, 1), f32), jnp.eye(C, dtype=f32))       # (W*C, C)
    red_o = jnp.kron(jnp.ones((W, 1), f32), jnp.eye(Cout, dtype=f32))    # (W*Cout, Cout)

    i_idx = (jnp.arange(NH, dtype=jnp.int32) % H).reshape(NH, 1)   # slab row -> image row

    args = (i_idx, x_slab, w1bd, g1, b1, w2band, g2, b2, w3bd, g3, b3,
            red_c, red_c.T, red_o, red_o.T)

    def fullspec(shape):
        nd = len(shape)
        return pl.BlockSpec(shape, lambda i, _nd=nd: (0,) * _nd)

    kernel = functools.partial(bottleneck_kernel, H=H, W=W, mm_dtype=mm_dtype)
    out_slab = pl.pallas_call(
        kernel,
        out_shape=jax.ShapeDtypeStruct((NH, W * Cout), f32),
        grid=(1,),
        in_specs=[fullspec(a.shape) for a in args],
        out_specs=fullspec((NH, W * Cout)),
        scratch_shapes=[
            # +-1-row halo scratch for the conv2 di taps (halo rows are never zero-filled,
            # only select-masked).  It is tiny (~24 KiB), so it stays f32 -- the review's
            # bf16-scratch item targeted rev 2's (M, 9*C) im2col buffer, which no longer
            # exists in the slab formulation.
            pltpu.VMEM((NH + 16, W * C), f32),
        ],
        compiler_params=pltpu.CompilerParams(
            # grid=(1,) at demo size; once M-tiled, the row-block axis should be
            # "parallel" (2 TensorCores on v7x) with only a BN-stats axis "arbitrary".
            dimension_semantics=("arbitrary",),
            # Deliberate, generation-safe limit: actual use is ~1.5 MiB (operands +
            # double buffers + scratch), far under every generation's scoped default.
            vmem_limit_bytes=8 * 1024 * 1024,
        ),
    )(*args)

    out_nhwc = out_slab.reshape(N, H, W, Cout)
    return jnp.transpose(out_nhwc, (0, 3, 1, 2))               # NHWC -> NCHW


def bottleneck_reference(x_nchw, params, mm_dtype=jnp.float32):
    """Pure-JAX (XLA conv) reference.  mm_dtype sets the conv-operand precision so both
    the f32 and the bf16-operand kernel configurations can be verified."""
    w1, g1, b1, w2, g2, b2, w3, g3, b3 = params
    Cin = x_nchw.shape[1]
    C = w1.shape[1]
    Cout = w3.shape[1]

    def conv(x, w_hwio, pad):
        return jax.lax.conv_general_dilated(
            x.astype(mm_dtype), w_hwio.astype(mm_dtype),
            window_strides=(1, 1), padding=[(pad, pad), (pad, pad)],
            dimension_numbers=("NCHW", "HWIO", "NCHW"),
            preferred_element_type=jnp.float32)

    def bn(x, g, b):
        mean = jnp.mean(x, axis=(0, 2, 3), keepdims=True)
        var = jnp.mean((x - mean) ** 2, axis=(0, 2, 3), keepdims=True)
        return ((x - mean) * jax.lax.rsqrt(var + EPS)
                * g.reshape(1, -1, 1, 1) + b.reshape(1, -1, 1, 1))

    h = jax.nn.relu(bn(conv(x_nchw, w1.reshape(1, 1, Cin, C), 0), g1, b1))
    h = jax.nn.relu(bn(conv(h, w2, 1), g2, b2))                 # w2 is HWIO (3,3,C,C)
    h = bn(conv(h, w3.reshape(1, 1, C, Cout), 0), g3, b3)
    return jax.nn.relu(h + x_nchw)


if __name__ == "__main__":
    key = jax.random.PRNGKey(0)
    k_x, k_w1, k_w2, k_w3 = jax.random.split(key, 4)

    # BottleNeck(in_channels=32, out_channels=8, stride=1, shortcut=None)
    out_channels = 8
    in_channels = out_channels * 4   # identity shortcut requires Cin == 4 * out_channels
    Cout = out_channels * 4
    N, H, W = 2, 16, 16

    x = jax.random.normal(k_x, (N, in_channels, H, W), jnp.float32)

    # Deterministic synthetic parameters (conv weights stored channels-last / HWIO).
    w1 = jax.random.normal(k_w1, (in_channels, out_channels), jnp.float32) * 0.1
    w2 = jax.random.normal(k_w2, (3, 3, out_channels, out_channels), jnp.float32) * 0.1
    w3 = jax.random.normal(k_w3, (out_channels, Cout), jnp.float32) * 0.1
    ones = lambda c: jnp.ones((1, c), jnp.float32)    # BN weight default init
    zeros = lambda c: jnp.zeros((1, c), jnp.float32)  # BN bias default init
    params = (w1, ones(out_channels), zeros(out_channels),
              w2, ones(out_channels), zeros(out_channels),
              w3, ones(Cout), zeros(Cout))

    # 1) Fast path: bf16 MXU operands, f32 accumulation (the reviewed configuration).
    out = bottleneck_forward(x, params)
    out = jax.block_until_ready(out)
    assert out.shape == (N, Cout, H, W)

    # 2) Tight algorithm check with f32 MXU operands (no bf16 re-rounding noise).
    out_f32 = bottleneck_forward(x, params, mm_dtype=jnp.float32)
    ref_f32 = bottleneck_reference(x, params, mm_dtype=jnp.float32)
    err_f32 = float(jnp.max(jnp.abs(out_f32 - ref_f32)))
    assert jnp.allclose(out_f32, ref_f32, atol=1e-3, rtol=1e-3), (
        f"f32 max abs err = {err_f32}")

    # 3) Sanity check of the bf16 fast path against a bf16-operand reference; looser
    #    bound because isolated 1-ulp bf16 re-roundings of intermediates are amplified
    #    by the three batch-norm rescalings.
    ref_bf = bottleneck_reference(x, params, mm_dtype=MATMUL_DTYPE)
    err_bf = float(jnp.max(jnp.abs(out - ref_bf)))
    assert jnp.allclose(out, ref_bf, atol=2e-2, rtol=2e-2), (
        f"bf16 max abs err = {err_bf}")

    print("KERNEL_OK")
</pallas_src>

<mosaic_0001>
module attributes {stable_mosaic.version = 11 : i64} {
  func.func @bottleneck_kernel(%arg0: i32, %arg1: memref<32x1xi32, #tpu.memory_space<vmem>>, %arg2: memref<32x512xf32, #tpu.memory_space<vmem>>, %arg3: memref<512x128xbf16, #tpu.memory_space<vmem>>, %arg4: memref<1x8xf32, #tpu.memory_space<vmem>>, %arg5: memref<1x8xf32, #tpu.memory_space<vmem>>, %arg6: memref<384x128xbf16, #tpu.memory_space<vmem>>, %arg7: memref<1x8xf32, #tpu.memory_space<vmem>>, %arg8: memref<1x8xf32, #tpu.memory_space<vmem>>, %arg9: memref<128x512xbf16, #tpu.memory_space<vmem>>, %arg10: memref<1x32xf32, #tpu.memory_space<vmem>>, %arg11: memref<1x32xf32, #tpu.memory_space<vmem>>, %arg12: memref<128x8xf32, #tpu.memory_space<vmem>>, %arg13: memref<8x128xf32, #tpu.memory_space<vmem>>, %arg14: memref<512x32xf32, #tpu.memory_space<vmem>>, %arg15: memref<32x512xf32, #tpu.memory_space<vmem>>, %arg16: memref<32x512xf32, #tpu.memory_space<vmem>>, %arg17: memref<48x128xf32, #tpu.memory_space<vmem>>) attributes {dimension_semantics = [#tpu.dimension_semantics<arbitrary>], iteration_bounds = array<i64: 1>, scalar_prefetch = 0 : i64, scratch_operands = 1 : i64, tpu.core_type = #tpu.core_type<tc>, window_params = [{pipeline_mode = #tpu.pipeline_mode<synchronous>, transform_indices = @transform_0, window_bounds = array<i64: 32, 1>}, {pipeline_mode = #tpu.pipeline_mode<synchronous>, transform_indices = @transform_1, window_bounds = array<i64: 32, 512>}, {pipeline_mode = #tpu.pipeline_mode<synchronous>, transform_indices = @transform_2, window_bounds = array<i64: 512, 128>}, {pipeline_mode = #tpu.pipeline_mode<synchronous>, transform_indices = @transform_3, window_bounds = array<i64: 1, 8>}, {pipeline_mode = #tpu.pipeline_mode<synchronous>, transform_indices = @transform_4, window_bounds = array<i64: 1, 8>}, {pipeline_mode = #tpu.pipeline_mode<synchronous>, transform_indices = @transform_5, window_bounds = array<i64: 384, 128>}, {pipeline_mode = #tpu.pipeline_mode<synchronous>, transform_indices = @transform_6, window_bounds = array<i64: 1, 8>}, {pipeline_mode = #tpu.pipeline_mode<synchronous>, transform_indices = @transform_7, window_bounds = array<i64: 1, 8>}, {pipeline_mode = #tpu.pipeline_mode<synchronous>, transform_indices = @transform_8, window_bounds = array<i64: 128, 512>}, {pipeline_mode = #tpu.pipeline_mode<synchronous>, transform_indices = @transform_9, window_bounds = array<i64: 1, 32>}, {pipeline_mode = #tpu.pipeline_mode<synchronous>, transform_indices = @transform_10, window_bounds = array<i64: 1, 32>}, {pipeline_mode = #tpu.pipeline_mode<synchronous>, transform_indices = @transform_11, window_bounds = array<i64: 128, 8>}, {pipeline_mode = #tpu.pipeline_mode<synchronous>, transform_indices = @transform_12, window_bounds = array<i64: 8, 128>}, {pipeline_mode = #tpu.pipeline_mode<synchronous>, transform_indices = @transform_13, window_bounds = array<i64: 512, 32>}, {pipeline_mode = #tpu.pipeline_mode<synchronous>, transform_indices = @transform_14, window_bounds = array<i64: 32, 512>}, {pipeline_mode = #tpu.pipeline_mode<synchronous>, transform_indices = @transform_15, window_bounds = array<i64: 32, 512>}]} {
    %cst = arith.constant 1.000000e+00 : f32
    %0 = vector.broadcast %cst : f32 to vector<1x32xf32>
    %c0 = arith.constant 0 : index
    %c0_0 = arith.constant 0 : index
    %1 = vector.load %arg2[%c0, %c0_0] : memref<32x512xf32, #tpu.memory_space<vmem>>, vector<32x512xf32>
    %2 = arith.truncf %1 : vector<32x512xf32> to vector<32x512xbf16>
    %c0_1 = arith.constant 0 : index
    %c0_2 = arith.constant 0 : index
    %3 = vector.load %arg3[%c0_1, %c0_2] : memref<512x128xbf16, #tpu.memory_space<vmem>>, vector<512x128xbf16>
    %cst_3 = arith.constant dense<0.000000e+00> : vector<32x128xf32>
    %4 = tpu.matmul %2, %3, %cst_3 {dimension_numbers = #tpu.dot_dimension_numbers<[1], [0], [0], [1], [0, 0, 1, 1], [], []>} : vector<32x512xbf16>, vector<512x128xbf16>, vector<32x128xf32> -> vector<32x128xf32>
    %c0_4 = arith.constant 0 : index
    %c0_5 = arith.constant 0 : index
    %5 = vector.load %arg12[%c0_4, %c0_5] : memref<128x8xf32, #tpu.memory_space<vmem>>, vector<128x8xf32>
    %cst_6 = arith.constant dense<0.000000e+00> : vector<1x128xf32>
    %6 = tpu.matmul %0, %4, %cst_6 {dimension_numbers = #tpu.dot_dimension_numbers<[1], [0], [0], [1], [0, 0, 1, 1], [], []>} : vector<1x32xf32>, vector<32x128xf32>, vector<1x128xf32> -> vector<1x128xf32>
    %7 = arith.mulf %4, %4 : vector<32x128xf32>
    %cst_7 = arith.constant dense<0.000000e+00> : vector<1x128xf32>
    %8 = tpu.matmul %0, %7, %cst_7 {dimension_numbers = #tpu.dot_dimension_numbers<[1], [0], [0], [1], [0, 0, 1, 1], [], []>} : vector<1x32xf32>, vector<32x128xf32>, vector<1x128xf32> -> vector<1x128xf32>
    %cst_8 = arith.constant dense<0.000000e+00> : vector<1x8xf32>
    %9 = tpu.matmul %6, %5, %cst_8 {dimension_numbers = #tpu.dot_dimension_numbers<[1], [0], [0], [1], [0, 0, 1, 1], [], []>} : vector<1x128xf32>, vector<128x8xf32>, vector<1x8xf32> -> vector<1x8xf32>
    %cst_9 = arith.constant dense<0.000000e+00> : vector<1x8xf32>
    %10 = tpu.matmul %8, %5, %cst_9 {dimension_numbers = #tpu.dot_dimension_numbers<[1], [0], [0], [1], [0, 0, 1, 1], [], []>} : vector<1x128xf32>, vector<128x8xf32>, vector<1x8xf32> -> vector<1x8xf32>
    %cst_10 = arith.constant 5.120000e+02 : f32
    %11 = vector.broadcast %cst_10 : f32 to vector<1x8xf32>
    %12 = arith.divf %9, %11 : vector<1x8xf32>
    %cst_11 = arith.constant 5.120000e+02 : f32
    %13 = vector.broadcast %cst_11 : f32 to vector<1x8xf32>
    %14 = arith.divf %10, %13 : vector<1x8xf32>
    %15 = arith.mulf %12, %12 : vector<1x8xf32>
    %16 = arith.subf %14, %15 : vector<1x8xf32>
    %c0_12 = arith.constant 0 : index
    %c0_13 = arith.constant 0 : index
    %17 = vector.load %arg4[%c0_12, %c0_13] : memref<1x8xf32, #tpu.memory_space<vmem>>, vector<1x8xf32>
    %cst_14 = arith.constant 9.99999974E-6 : f32
    %18 = vector.broadcast %cst_14 : f32 to vector<1x8xf32>
    %19 = arith.addf %16, %18 : vector<1x8xf32>
    %20 = math.rsqrt %19 : vector<1x8xf32>
    %21 = arith.mulf %17, %20 : vector<1x8xf32>
    %c0_15 = arith.constant 0 : index
    %c0_16 = arith.constant 0 : index
    %22 = vector.load %arg5[%c0_15, %c0_16] : memref<1x8xf32, #tpu.memory_space<vmem>>, vector<1x8xf32>
    %23 = arith.mulf %12, %21 : vector<1x8xf32>
    %24 = arith.subf %22, %23 : vector<1x8xf32>
    %c0_17 = arith.constant 0 : index
    %c0_18 = arith.constant 0 : index
    %25 = vector.load %arg13[%c0_17, %c0_18] : memref<8x128xf32, #tpu.memory_space<vmem>>, vector<8x128xf32>
    %cst_19 = arith.constant dense<0.000000e+00> : vector<1x128xf32>
    %26 = tpu.matmul %21, %25, %cst_19 {dimension_numbers = #tpu.dot_dimension_numbers<[1], [0], [0], [1], [0, 0, 1, 1], [], []>} : vector<1x8xf32>, vector<8x128xf32>, vector<1x128xf32> -> vector<1x128xf32>
    %c0_20 = arith.constant 0 : index
    %c0_21 = arith.constant 0 : index
    %27 = vector.load %arg13[%c0_20, %c0_21] : memref<8x128xf32, #tpu.memory_space<vmem>>, vector<8x128xf32>
    %cst_22 = arith.constant dense<0.000000e+00> : vector<1x128xf32>
    %28 = tpu.matmul %24, %27, %cst_22 {dimension_numbers = #tpu.dot_dimension_numbers<[1], [0], [0], [1], [0, 0, 1, 1], [], []>} : vector<1x8xf32>, vector<8x128xf32>, vector<1x128xf32> -> vector<1x128xf32>
    %29 = vector.broadcast %26 : vector<1x128xf32> to vector<32x128xf32>
    %30 = arith.mulf %4, %29 : vector<32x128xf32>
    %31 = vector.broadcast %28 : vector<1x128xf32> to vector<32x128xf32>
    %32 = arith.addf %30, %31 : vector<32x128xf32>
    %cst_23 = arith.constant 0.000000e+00 : f32
    %33 = vector.broadcast %cst_23 : f32 to vector<32x128xf32>
    %34 = arith.maximumf %32, %33 : vector<32x128xf32>
    %c8 = arith.constant 8 : index
    %c0_24 = arith.constant 0 : index
    %35 = vector.load %arg17[%c8, %c0_24] : memref<48x128xf32, #tpu.memory_space<vmem>>, vector<32x128xf32>
    tpu.vector_store %arg17[%c8, %c0_24], %34 {strides = array<i32>} : memref<48x128xf32, #tpu.memory_space<vmem>>, vector<32x128xf32>,
    %c0_25 = arith.constant 0 : index
    %c0_26 = arith.constant 0 : index
    %36 = vector.load %arg1[%c0_25, %c0_26] : memref<32x1xi32, #tpu.memory_space<vmem>>, vector<32x1xi32>
    %c1_i32 = arith.constant 1 : i32
    %37 = vector.broadcast %c1_i32 : i32 to vector<32x1xi32>
    %38 = arith.cmpi sge, %36, %37 : vector<32x1xi32>
    %c7 = arith.constant 7 : index
    %c0_27 = arith.constant 0 : index
    %39 = vector.load %arg17[%c7, %c0_27] : memref<48x128xf32, #tpu.memory_space<vmem>>, vector<32x128xf32>
    %cst_28 = arith.constant 0.000000e+00 : f32
    %40 = vector.shape_cast %38 : vector<32x1xi1> to vector<32x1xi1>
    %41 = vector.broadcast %40 : vector<32x1xi1> to vector<32x128xi1>
    %42 = vector.broadcast %cst_28 : f32 to vector<32x128xf32>
    %43 = arith.select %41, %39, %42 : vector<32x128xi1>, vector<32x128xf32>
    %c14_i32 = arith.constant 14 : i32
    %44 = vector.broadcast %c14_i32 : i32 to vector<32x1xi32>
    %45 = arith.cmpi sle, %36, %44 : vector<32x1xi32>
    %c9 = arith.constant 9 : index
    %c0_29 = arith.constant 0 : index
    %46 = vector.load %arg17[%c9, %c0_29] : memref<48x128xf32, #tpu.memory_space<vmem>>, vector<32x128xf32>
    %cst_30 = arith.constant 0.000000e+00 : f32
    %47 = vector.shape_cast %45 : vector<32x1xi1> to vector<32x1xi1>
    %48 = vector.broadcast %47 : vector<32x1xi1> to vector<32x128xi1>
    %49 = vector.broadcast %cst_30 : f32 to vector<32x128xf32>
    %50 = arith.select %48, %46, %49 : vector<32x128xi1>, vector<32x128xf32>
    %51 = tpu.concatenate %43, %34, %50 in 1 : vector<32x128xf32>, vector<32x128xf32>, vector<32x128xf32> -> vector<32x384xf32>
    %52 = arith.truncf %51 : vector<32x384xf32> to vector<32x384xbf16>
    %c0_31 = arith.constant 0 : index
    %c0_32 = arith.constant 0 : index
    %53 = vector.load %arg6[%c0_31, %c0_32] : memref<384x128xbf16, #tpu.memory_space<vmem>>, vector<384x128xbf16>
    %cst_33 = arith.constant dense<0.000000e+00> : vector<32x128xf32>
    %54 = tpu.matmul %52, %53, %cst_33 {dimension_numbers = #tpu.dot_dimension_numbers<[1], [0], [0], [1], [0, 0, 1, 1], [], []>} : vector<32x384xbf16>, vector<384x128xbf16>, vector<32x128xf32> -> vector<32x128xf32>
    %c0_34 = arith.constant 0 : index
    %c0_35 = arith.constant 0 : index
    %55 = vector.load %arg12[%c0_34, %c0_35] : memref<128x8xf32, #tpu.memory_space<vmem>>, vector<128x8xf32>
    %cst_36 = arith.constant dense<0.000000e+00> : vector<1x128xf32>
    %56 = tpu.matmul %0, %54, %cst_36 {dimension_numbers = #tpu.dot_dimension_numbers<[1], [0], [0], [1], [0, 0, 1, 1], [], []>} : vector<1x32xf32>, vector<32x128xf32>, vector<1x128xf32> -> vector<1x128xf32>
    %57 = arith.mulf %54, %54 : vector<32x128xf32>
    %cst_37 = arith.constant dense<0.000000e+00> : vector<1x128xf32>
    %58 = tpu.matmul %0, %57, %cst_37 {dimension_numbers = #tpu.dot_dimension_numbers<[1], [0], [0], [1], [0, 0, 1, 1], [], []>} : vector<1x32xf32>, vector<32x128xf32>, vector<1x128xf32> -> vector<1x128xf32>
    %cst_38 = arith.constant dense<0.000000e+00> : vector<1x8xf32>
    %59 = tpu.matmul %56, %55, %cst_38 {dimension_numbers = #tpu.dot_dimension_numbers<[1], [0], [0], [1], [0, 0, 1, 1], [], []>} : vector<1x128xf32>, vector<128x8xf32>, vector<1x8xf32> -> vector<1x8xf32>
    %cst_39 = arith.constant dense<0.000000e+00> : vector<1x8xf32>
    %60 = tpu.matmul %58, %55, %cst_39 {dimension_numbers = #tpu.dot_dimension_numbers<[1], [0], [0], [1], [0, 0, 1, 1], [], []>} : vector<1x128xf32>, vector<128x8xf32>, vector<1x8xf32> -> vector<1x8xf32>
    %cst_40 = arith.constant 5.120000e+02 : f32
    %61 = vector.broadcast %cst_40 : f32 to vector<1x8xf32>
    %62 = arith.divf %59, %61 : vector<1x8xf32>
    %cst_41 = arith.constant 5.120000e+02 : f32
    %63 = vector.broadcast %cst_41 : f32 to vector<1x8xf32>
    %64 = arith.divf %60, %63 : vector<1x8xf32>
    %65 = arith.mulf %62, %62 : vector<1x8xf32>
    %66 = arith.subf %64, %65 : vector<1x8xf32>
    %c0_42 = arith.constant 0 : index
    %c0_43 = arith.constant 0 : index
    %67 = vector.load %arg7[%c0_42, %c0_43] : memref<1x8xf32, #tpu.memory_space<vmem>>, vector<1x8xf32>
    %cst_44 = arith.constant 9.99999974E-6 : f32
    %68 = vector.broadcast %cst_44 : f32 to vector<1x8xf32>
    %69 = arith.addf %66, %68 : vector<1x8xf32>
    %70 = math.rsqrt %69 : vector<1x8xf32>
    %71 = arith.mulf %67, %70 : vector<1x8xf32>
    %c0_45 = arith.constant 0 : index
    %c0_46 = arith.constant 0 : index
    %72 = vector.load %arg8[%c0_45, %c0_46] : memref<1x8xf32, #tpu.memory_space<vmem>>, vector<1x8xf32>
    %73 = arith.mulf %62, %71 : vector<1x8xf32>
    %74 = arith.subf %72, %73 : vector<1x8xf32>
    %c0_47 = arith.constant 0 : index
    %c0_48 = arith.constant 0 : index
    %75 = vector.load %arg13[%c0_47, %c0_48] : memref<8x128xf32, #tpu.memory_space<vmem>>, vector<8x128xf32>
    %cst_49 = arith.constant dense<0.000000e+00> : vector<1x128xf32>
    %76 = tpu.matmul %71, %75, %cst_49 {dimension_numbers = #tpu.dot_dimension_numbers<[1], [0], [0], [1], [0, 0, 1, 1], [], []>} : vector<1x8xf32>, vector<8x128xf32>, vector<1x128xf32> -> vector<1x128xf32>
    %c0_50 = arith.constant 0 : index
    %c0_51 = arith.constant 0 : index
    %77 = vector.load %arg13[%c0_50, %c0_51] : memref<8x128xf32, #tpu.memory_space<vmem>>, vector<8x128xf32>
    %cst_52 = arith.constant dense<0.000000e+00> : vector<1x128xf32>
    %78 = tpu.matmul %74, %77, %cst_52 {dimension_numbers = #tpu.dot_dimension_numbers<[1], [0], [0], [1], [0, 0, 1, 1], [], []>} : vector<1x8xf32>, vector<8x128xf32>, vector<1x128xf32> -> vector<1x128xf32>
    %79 = vector.broadcast %76 : vector<1x128xf32> to vector<32x128xf32>
    %80 = arith.mulf %54, %79 : vector<32x128xf32>
    %81 = vector.broadcast %78 : vector<1x128xf32> to vector<32x128xf32>
    %82 = arith.addf %80, %81 : vector<32x128xf32>
    %cst_53 = arith.constant 0.000000e+00 : f32
    %83 = vector.broadcast %cst_53 : f32 to vector<32x128xf32>
    %84 = arith.maximumf %82, %83 : vector<32x128xf32>
    %85 = arith.truncf %84 : vector<32x128xf32> to vector<32x128xbf16>
    %c0_54 = arith.constant 0 : index
    %c0_55 = arith.constant 0 : index
    %86 = vector.load %arg9[%c0_54, %c0_55] : memref<128x512xbf16, #tpu.memory_space<vmem>>, vector<128x512xbf16>
    %cst_56 = arith.constant dense<0.000000e+00> : vector<32x512xf32>
    %87 = tpu.matmul %85, %86, %cst_56 {dimension_numbers = #tpu.dot_dimension_numbers<[1], [0], [0], [1], [0, 0, 1, 1], [], []>} : vector<32x128xbf16>, vector<128x512xbf16>, vector<32x512xf32> -> vector<32x512xf32>
    %c0_57 = arith.constant 0 : index
    %c0_58 = arith.constant 0 : index
    %88 = vector.load %arg14[%c0_57, %c0_58] : memref<512x32xf32, #tpu.memory_space<vmem>>, vector<512x32xf32>
    %cst_59 = arith.constant dense<0.000000e+00> : vector<1x512xf32>
    %89 = tpu.matmul %0, %87, %cst_59 {dimension_numbers = #tpu.dot_dimension_numbers<[1], [0], [0], [1], [0, 0, 1, 1], [], []>} : vector<1x32xf32>, vector<32x512xf32>, vector<1x512xf32> -> vector<1x512xf32>
    %90 = arith.mulf %87, %87 : vector<32x512xf32>
    %cst_60 = arith.constant dense<0.000000e+00> : vector<1x512xf32>
    %91 = tpu.matmul %0, %90, %cst_60 {dimension_numbers = #tpu.dot_dimension_numbers<[1], [0], [0], [1], [0, 0, 1, 1], [], []>} : vector<1x32xf32>, vector<32x512xf32>, vector<1x512xf32> -> vector<1x512xf32>
    %cst_61 = arith.constant dense<0.000000e+00> : vector<1x32xf32>
    %92 = tpu.matmul %89, %88, %cst_61 {dimension_numbers = #tpu.dot_dimension_numbers<[1], [0], [0], [1], [0, 0, 1, 1], [], []>} : vector<1x512xf32>, vector<512x32xf32>, vector<1x32xf32> -> vector<1x32xf32>
    %cst_62 = arith.constant dense<0.000000e+00> : vector<1x32xf32>
    %93 = tpu.matmul %91, %88, %cst_62 {dimension_numbers = #tpu.dot_dimension_numbers<[1], [0], [0], [1], [0, 0, 1, 1], [], []>} : vector<1x512xf32>, vector<512x32xf32>, vector<1x32xf32> -> vector<1x32xf32>
    %cst_63 = arith.constant 5.120000e+02 : f32
    %94 = vector.broadcast %cst_63 : f32 to vector<1x32xf32>
    %95 = arith.divf %92, %94 : vector<1x32xf32>
    %cst_64 = arith.constant 5.120000e+02 : f32
    %96 = vector.broadcast %cst_64 : f32 to vector<1x32xf32>
    %97 = arith.divf %93, %96 : vector<1x32xf32>
    %98 = arith.mulf %95, %95 : vector<1x32xf32>
    %99 = arith.subf %97, %98 : vector<1x32xf32>
    %c0_65 = arith.constant 0 : index
    %c0_66 = arith.constant 0 : index
    %100 = vector.load %arg10[%c0_65, %c0_66] : memref<1x32xf32, #tpu.memory_space<vmem>>, vector<1x32xf32>
    %cst_67 = arith.constant 9.99999974E-6 : f32
    %101 = vector.broadcast %cst_67 : f32 to vector<1x32xf32>
    %102 = arith.addf %99, %101 : vector<1x32xf32>
    %103 = math.rsqrt %102 : vector<1x32xf32>
    %104 = arith.mulf %100, %103 : vector<1x32xf32>
    %c0_68 = arith.constant 0 : index
    %c0_69 = arith.constant 0 : index
    %105 = vector.load %arg11[%c0_68, %c0_69] : memref<1x32xf32, #tpu.memory_space<vmem>>, vector<1x32xf32>
    %106 = arith.mulf %95, %104 : vector<1x32xf32>
    %107 = arith.subf %105, %106 : vector<1x32xf32>
    %c0_70 = arith.constant 0 : index
    %c0_71 = arith.constant 0 : index
    %108 = vector.load %arg15[%c0_70, %c0_71] : memref<32x512xf32, #tpu.memory_space<vmem>>, vector<32x512xf32>
    %cst_72 = arith.constant dense<0.000000e+00> : vector<1x512xf32>
    %109 = tpu.matmul %104, %108, %cst_72 {dimension_numbers = #tpu.dot_dimension_numbers<[1], [0], [0], [1], [0, 0, 1, 1], [], []>} : vector<1x32xf32>, vector<32x512xf32>, vector<1x512xf32> -> vector<1x512xf32>
    %c0_73 = arith.constant 0 : index
    %c0_74 = arith.constant 0 : index
    %110 = vector.load %arg15[%c0_73, %c0_74] : memref<32x512xf32, #tpu.memory_space<vmem>>, vector<32x512xf32>
    %cst_75 = arith.constant dense<0.000000e+00> : vector<1x512xf32>
    %111 = tpu.matmul %107, %110, %cst_75 {dimension_numbers = #tpu.dot_dimension_numbers<[1], [0], [0], [1], [0, 0, 1, 1], [], []>} : vector<1x32xf32>, vector<32x512xf32>, vector<1x512xf32> -> vector<1x512xf32>
    %112 = vector.broadcast %109 : vector<1x512xf32> to vector<32x512xf32>
    %113 = arith.mulf %87, %112 : vector<32x512xf32>
    %114 = vector.broadcast %111 : vector<1x512xf32> to vector<32x512xf32>
    %115 = arith.addf %113, %114 : vector<32x512xf32>
    %c0_76 = arith.constant 0 : index
    %c0_77 = arith.constant 0 : index
    %116 = vector.load %arg2[%c0_76, %c0_77] : memref<32x512xf32, #tpu.memory_space<vmem>>, vector<32x512xf32>
    %117 = arith.addf %115, %116 : vector<32x512xf32>
    %cst_78 = arith.constant 0.000000e+00 : f32
    %118 = vector.broadcast %cst_78 : f32 to vector<32x512xf32>
    %119 = arith.maximumf %117, %118 : vector<32x512xf32>
    %c0_79 = arith.constant 0 : index
    %c0_80 = arith.constant 0 : index
    %120 = vector.load %arg16[%c0_79, %c0_80] : memref<32x512xf32, #tpu.memory_space<vmem>>, vector<32x512xf32>
    tpu.vector_store %arg16[%c0_79, %c0_80], %119 {strides = array<i32>} : memref<32x512xf32, #tpu.memory_space<vmem>>, vector<32x512xf32>,
    return
  }
  func.func @transform_0(%arg0: i32) -> (i32, i32) {
    %c0_i32 = arith.constant 0 : i32
    %c0_i32_0 = arith.constant 0 : i32
    %c0_i32_1 = arith.constant 0 : i32
    return %c0_i32, %c0_i32_0 : i32, i32
  }
  func.func @transform_1(%arg0: i32) -> (i32, i32) {
    %c0_i32 = arith.constant 0 : i32
    %c0_i32_0 = arith.constant 0 : i32
    %c0_i32_1 = arith.constant 0 : i32
    return %c0_i32, %c0_i32_0 : i32, i32
  }
  func.func @transform_2(%arg0: i32) -> (i32, i32) {
    %c0_i32 = arith.constant 0 : i32
    %c0_i32_0 = arith.constant 0 : i32
    %c0_i32_1 = arith.constant 0 : i32
    return %c0_i32, %c0_i32_0 : i32, i32
  }
  func.func @transform_3(%arg0: i32) -> (i32, i32) {
    %c0_i32 = arith.constant 0 : i32
    %c0_i32_0 = arith.constant 0 : i32
    %c0_i32_1 = arith.constant 0 : i32
    return %c0_i32, %c0_i32_0 : i32, i32
  }
  func.func @transform_4(%arg0: i32) -> (i32, i32) {
    %c0_i32 = arith.constant 0 : i32
    %c0_i32_0 = arith.constant 0 : i32
    %c0_i32_1 = arith.constant 0 : i32
    return %c0_i32, %c0_i32_0 : i32, i32
  }
  func.func @transform_5(%arg0: i32) -> (i32, i32) {
    %c0_i32 = arith.constant 0 : i32
    %c0_i32_0 = arith.constant 0 : i32
    %c0_i32_1 = arith.constant 0 : i32
    return %c0_i32, %c0_i32_0 : i32, i32
  }
  func.func @transform_6(%arg0: i32) -> (i32, i32) {
    %c0_i32 = arith.constant 0 : i32
    %c0_i32_0 = arith.constant 0 : i32
    %c0_i32_1 = arith.constant 0 : i32
    return %c0_i32, %c0_i32_0 : i32, i32
  }
  func.func @transform_7(%arg0: i32) -> (i32, i32) {
    %c0_i32 = arith.constant 0 : i32
    %c0_i32_0 = arith.constant 0 : i32
    %c0_i32_1 = arith.constant 0 : i32
    return %c0_i32, %c0_i32_0 : i32, i32
  }
  func.func @transform_8(%arg0: i32) -> (i32, i32) {
    %c0_i32 = arith.constant 0 : i32
    %c0_i32_0 = arith.constant 0 : i32
    %c0_i32_1 = arith.constant 0 : i32
    return %c0_i32, %c0_i32_0 : i32, i32
  }
  func.func @transform_9(%arg0: i32) -> (i32, i32) {
    %c0_i32 = arith.constant 0 : i32
    %c0_i32_0 = arith.constant 0 : i32
    %c0_i32_1 = arith.constant 0 : i32
    return %c0_i32, %c0_i32_0 : i32, i32
  }
  func.func @transform_10(%arg0: i32) -> (i32, i32) {
    %c0_i32 = arith.constant 0 : i32
    %c0_i32_0 = arith.constant 0 : i32
    %c0_i32_1 = arith.constant 0 : i32
    return %c0_i32, %c0_i32_0 : i32, i32
  }
  func.func @transform_11(%arg0: i32) -> (i32, i32) {
    %c0_i32 = arith.constant 0 : i32
    %c0_i32_0 = arith.constant 0 : i32
    %c0_i32_1 = arith.constant 0 : i32
    return %c0_i32, %c0_i32_0 : i32, i32
  }
  func.func @transform_12(%arg0: i32) -> (i32, i32) {
    %c0_i32 = arith.constant 0 : i32
    %c0_i32_0 = arith.constant 0 : i32
    %c0_i32_1 = arith.constant 0 : i32
    return %c0_i32, %c0_i32_0 : i32, i32
  }
  func.func @transform_13(%arg0: i32) -> (i32, i32) {
    %c0_i32 = arith.constant 0 : i32
    %c0_i32_0 = arith.constant 0 : i32
    %c0_i32_1 = arith.constant 0 : i32
    return %c0_i32, %c0_i32_0 : i32, i32
  }
  func.func @transform_14(%arg0: i32) -> (i32, i32) {
    %c0_i32 = arith.constant 0 : i32
    %c0_i32_0 = arith.constant 0 : i32
    %c0_i32_1 = arith.constant 0 : i32
    return %c0_i32, %c0_i32_0 : i32, i32
  }
  func.func @transform_15(%arg0: i32) -> (i32, i32) {
    %c0_i32 = arith.constant 0 : i32
    %c0_i32_0 = arith.constant 0 : i32
    %c0_i32_1 = arith.constant 0 : i32
    return %c0_i32, %c0_i32_0 : i32, i32
  }
}

</mosaic_0001>

<llo_original>
// kernel: bottleneck_forward.1
$region0: #{bottleneck_forward.1}
  #allocation0 [shape = 'u32[]', space=smem, size = 0x4, offset = 0x4, fixed_abs, tag = 'smem constant byte address 0x4 - core index']
  #allocation1 [shape = 'u32[72,128]{1,0:T(1,128)}', space=vmem, size = 0x9000, scoped, tag = 'internal scratch']
  #allocation2 [shape = 'f32[48,128]{1,0:T(8,128)}', space=vmem, size = 0x6000, scoped, tag = 'scratch operand']
  %s0 = inlined_call_operand.vmem [shape: s32[32,1], index: 0, kind: input, shape index: {}]
  %s1 = inlined_call_operand.vmem [shape: f32[32,512], index: 1, kind: input, shape index: {}]
  %s2 = inlined_call_operand.vmem [shape: bf16[512,128], index: 2, kind: input, shape index: {}]
  %s3 = inlined_call_operand.vmem [shape: f32[1,8], index: 3, kind: input, shape index: {}]
  %s4 = inlined_call_operand.vmem [shape: f32[1,8], index: 4, kind: input, shape index: {}]
  %s5 = inlined_call_operand.vmem [shape: bf16[384,128], index: 5, kind: input, shape index: {}]
  %s6 = inlined_call_operand.vmem [shape: f32[1,8], index: 6, kind: input, shape index: {}]
  %s7 = inlined_call_operand.vmem [shape: f32[1,8], index: 7, kind: input, shape index: {}]
  %s8 = inlined_call_operand.vmem [shape: bf16[128,512], index: 8, kind: input, shape index: {}]
  %s9 = inlined_call_operand.vmem [shape: f32[1,32], index: 9, kind: input, shape index: {}]
  %s10 = inlined_call_operand.vmem [shape: f32[1,32], index: 10, kind: input, shape index: {}]
  %s11 = inlined_call_operand.vmem [shape: f32[128,8], index: 11, kind: input, shape index: {}]
  %s12 = inlined_call_operand.vmem [shape: f32[8,128], index: 12, kind: input, shape index: {}]
  %s13 = inlined_call_operand.vmem [shape: f32[512,32], index: 13, kind: input, shape index: {}]
  %s14 = inlined_call_operand.vmem [shape: f32[32,512], index: 14, kind: input, shape index: {}]
  %s15 = inlined_call_operand.vmem [shape: f32[32,512], index: 15, kind: output, shape index: {}]
  %s16 = sld [smem:[#allocation0]]
  $region70: #{bottleneck_forward.1} parent=0
    _
  %s18 = ssub.s32 1, %s16
  %s19 = scalar_select 0, %s18, %s16
  // Predicated region
  $region2: #{bottleneck_forward.1} parent=0 // pred_check
    _
  $region3: #{bottleneck_forward.1} parent=0 // pred_check_branch
    %21 = sbr.rel (0) target = $region5
  $region4: #{bottleneck_forward.1} parent=0 // pred_region
    _
  $region5: #{bottleneck_forward.1} parent=0 // pred_fallthru
    _
  // Predicated region
  $region6: #{bottleneck_forward.1} parent=0 // pred_check
    _
  $region7: #{bottleneck_forward.1} parent=0 // pred_check_branch
    %23 = sbr.rel (0) target = $region9
  $region8: #{bottleneck_forward.1} parent=0 // pred_region
    _
  $region9: #{bottleneck_forward.1} parent=0 // pred_fallthru
    _
  // Predicated region
  $region10: #{bottleneck_forward.1} parent=0 // pred_check
    _
  $region11: #{bottleneck_forward.1} parent=0 // pred_check_branch
    %25 = sbr.rel (0) target = $region13
  $region12: #{bottleneck_forward.1} parent=0 // pred_region
    _
  $region13: #{bottleneck_forward.1} parent=0 // pred_fallthru
    _
  // Predicated region
  $region14: #{bottleneck_forward.1} parent=0 // pred_check
    _
  $region15: #{bottleneck_forward.1} parent=0 // pred_check_branch
    %27 = sbr.rel (0) target = $region17
  $region16: #{bottleneck_forward.1} parent=0 // pred_region
    _
  $region17: #{bottleneck_forward.1} parent=0 // pred_fallthru
    _
  // Predicated region
  $region18: #{bottleneck_forward.1} parent=0 // pred_check
    _
  $region19: #{bottleneck_forward.1} parent=0 // pred_check_branch
    %29 = sbr.rel (0) target = $region21
  $region20: #{bottleneck_forward.1} parent=0 // pred_region
    _
  $region21: #{bottleneck_forward.1} parent=0 // pred_fallthru
    _
  // Predicated region
  $region22: #{bottleneck_forward.1} parent=0 // pred_check
    _
  $region23: #{bottleneck_forward.1} parent=0 // pred_check_branch
    %31 = sbr.rel (0) target = $region25
  $region24: #{bottleneck_forward.1} parent=0 // pred_region
    _
  $region25: #{bottleneck_forward.1} parent=0 // pred_fallthru
    _
  // Predicated region
  $region26: #{bottleneck_forward.1} parent=0 // pred_check
    _
  $region27: #{bottleneck_forward.1} parent=0 // pred_check_branch
    %33 = sbr.rel (0) target = $region29
  $region28: #{bottleneck_forward.1} parent=0 // pred_region
    _
  $region29: #{bottleneck_forward.1} parent=0 // pred_fallthru
    _
  // Predicated region
  $region30: #{bottleneck_forward.1} parent=0 // pred_check
    _
  $region31: #{bottleneck_forward.1} parent=0 // pred_check_branch
    %35 = sbr.rel (0) target = $region33
  $region32: #{bottleneck_forward.1} parent=0 // pred_region
    _
  $region33: #{bottleneck_forward.1} parent=0 // pred_fallthru
    _
  // Predicated region
  $region34: #{bottleneck_forward.1} parent=0 // pred_check
    _
  $region35: #{bottleneck_forward.1} parent=0 // pred_check_branch
    %37 = sbr.rel (0) target = $region37
  $region36: #{bottleneck_forward.1} parent=0 // pred_region
    _
  $region37: #{bottleneck_forward.1} parent=0 // pred_fallthru
    _
  // Predicated region
  $region38: #{bottleneck_forward.1} parent=0 // pred_check
    _
  $region39: #{bottleneck_forward.1} parent=0 // pred_check_branch
    %39 = sbr.rel (0) target = $region41
  $region40: #{bottleneck_forward.1} parent=0 // pred_region
    _
  $region41: #{bottleneck_forward.1} parent=0 // pred_fallthru
    _
  // Predicated region
  $region42: #{bottleneck_forward.1} parent=0 // pred_check
    _
  $region43: #{bottleneck_forward.1} parent=0 // pred_check_branch
    %41 = sbr.rel (0) target = $region45
  $region44: #{bottleneck_forward.1} parent=0 // pred_region
    _
  $region45: #{bottleneck_forward.1} parent=0 // pred_fallthru
    _
  // Predicated region
  $region46: #{bottleneck_forward.1} parent=0 // pred_check
    _
  $region47: #{bottleneck_forward.1} parent=0 // pred_check_branch
    %43 = sbr.rel (0) target = $region49
  $region48: #{bottleneck_forward.1} parent=0 // pred_region
    _
  $region49: #{bottleneck_forward.1} parent=0 // pred_fallthru
    _
  // Predicated region
  $region50: #{bottleneck_forward.1} parent=0 // pred_check
    _
  $region51: #{bottleneck_forward.1} parent=0 // pred_check_branch
    %45 = sbr.rel (0) target = $region53
  $region52: #{bottleneck_forward.1} parent=0 // pred_region
    _
  $region53: #{bottleneck_forward.1} parent=0 // pred_fallthru
    _
  // Predicated region
  $region54: #{bottleneck_forward.1} parent=0 // pred_check
    _
  $region55: #{bottleneck_forward.1} parent=0 // pred_check_branch
    %47 = sbr.rel (0) target = $region57
  $region56: #{bottleneck_forward.1} parent=0 // pred_region
    _
  $region57: #{bottleneck_forward.1} parent=0 // pred_fallthru
    _
  // Predicated region
  $region58: #{bottleneck_forward.1} parent=0 // pred_check
    _
  $region59: #{bottleneck_forward.1} parent=0 // pred_check_branch
    %49 = sbr.rel (0) target = $region61
  $region60: #{bottleneck_forward.1} parent=0 // pred_region
    _
  $region61: #{bottleneck_forward.1} parent=0 // pred_fallthru
    _
  %v50 = vld [vmem:[%s1] sm:$0xff]
  %v51 = vld [vmem:[%s1 + $0x8] sm:$0xff]
  %v52 = vld [vmem:[%s1 + $0x10] sm:$0xff]
  %v53 = vld [vmem:[%s1 + $0x18] sm:$0xff]
  %v54 = vld [vmem:[%s1 + $0x20] sm:$0xff]
  %v55 = vld [vmem:[%s1 + $0x28] sm:$0xff]
  %v56 = vld [vmem:[%s1 + $0x30] sm:$0xff]
  %v57 = vld [vmem:[%s1 + $0x38] sm:$0xff]
  %v58 = vld [vmem:[%s1 + $0x40] sm:$0xff]
  %v59 = vld [vmem:[%s1 + $0x48] sm:$0xff]
  %v60 = vld [vmem:[%s1 + $0x50] sm:$0xff]
  %v61 = vld [vmem:[%s1 + $0x58] sm:$0xff]
  %v62 = vld [vmem:[%s1 + $0x60] sm:$0xff]
  %v63 = vld [vmem:[%s1 + $0x68] sm:$0xff]
  %v64 = vld [vmem:[%s1 + $0x70] sm:$0xff]
  %v65 = vld [vmem:[%s1 + $0x78] sm:$0xff]
  %v66 = vpack.c.bf16 %v54, %v50
  %v67 = vpack.c.bf16 %v55, %v51
  %v68 = vpack.c.bf16 %v56, %v52
  %v69 = vpack.c.bf16 %v57, %v53
  %v70 = vpack.c.bf16 %v62, %v58
  %v71 = vpack.c.bf16 %v63, %v59
  %v72 = vpack.c.bf16 %v64, %v60
  %v73 = vpack.c.bf16 %v65, %v61
  %v74 = vld [vmem:[%s2] sm:$0xf]
  %v75 = vld [vmem:[%s2 + $0x4] sm:$0xf]
  %v76 = vld [vmem:[%s2 + $0x8] sm:$0xf]
  %v77 = vld [vmem:[%s2 + $0xc] sm:$0xf]
  %v78 = vld [vmem:[%s2 + $0x10] sm:$0xf]
  %v79 = vld [vmem:[%s2 + $0x14] sm:$0xf]
  %v80 = vld [vmem:[%s2 + $0x18] sm:$0xf]
  %v81 = vld [vmem:[%s2 + $0x1c] sm:$0xf]
  %v82 = vld [vmem:[%s2 + $0x20] sm:$0xf]
  %v83 = vld [vmem:[%s2 + $0x24] sm:$0xf]
  %v84 = vld [vmem:[%s2 + $0x28] sm:$0xf]
  %v85 = vld [vmem:[%s2 + $0x2c] sm:$0xf]
  %v86 = vld [vmem:[%s2 + $0x30] sm:$0xf]
  %v87 = vld [vmem:[%s2 + $0x34] sm:$0xf]
  %v88 = vld [vmem:[%s2 + $0x38] sm:$0xf]
  %v89 = vld [vmem:[%s2 + $0x3c] sm:$0xf]
  %v90 = vld [vmem:[%s2 + $0x40] sm:$0xf]
  %v91 = vld [vmem:[%s2 + $0x44] sm:$0xf]
  %v92 = vld [vmem:[%s2 + $0x48] sm:$0xf]
  %v93 = vld [vmem:[%s2 + $0x4c] sm:$0xf]
  %v94 = vld [vmem:[%s2 + $0x50] sm:$0xf]
  %v95 = vld [vmem:[%s2 + $0x54] sm:$0xf]
  %v96 = vld [vmem:[%s2 + $0x58] sm:$0xf]
  %v97 = vld [vmem:[%s2 + $0x5c] sm:$0xf]
  %v98 = vld [vmem:[%s2 + $0x60] sm:$0xf]
  %v99 = vld [vmem:[%s2 + $0x64] sm:$0xf]
  %v100 = vld [vmem:[%s2 + $0x68] sm:$0xf]
  %v101 = vld [vmem:[%s2 + $0x6c] sm:$0xf]
  %v102 = vld [vmem:[%s2 + $0x70] sm:$0xf]
  %v103 = vld [vmem:[%s2 + $0x74] sm:$0xf]
  %v104 = vld [vmem:[%s2 + $0x78] sm:$0xf]
  %v105 = vld [vmem:[%s2 + $0x7c] sm:$0xf]
  %v106 = vld [vmem:[%s2 + $0x80] sm:$0xf]
  %v107 = vld [vmem:[%s2 + $0x84] sm:$0xf]
  %v108 = vld [vmem:[%s2 + $0x88] sm:$0xf]
  %v109 = vld [vmem:[%s2 + $0x8c] sm:$0xf]
  %v110 = vld [vmem:[%s2 + $0x90] sm:$0xf]
  %v111 = vld [vmem:[%s2 + $0x94] sm:$0xf]
  %v112 = vld [vmem:[%s2 + $0x98] sm:$0xf]
  %v113 = vld [vmem:[%s2 + $0x9c] sm:$0xf]
  %v114 = vld [vmem:[%s2 + $0xa0] sm:$0xf]
  %v115 = vld [vmem:[%s2 + $0xa4] sm:$0xf]
  %v116 = vld [vmem:[%s2 + $0xa8] sm:$0xf]
  %v117 = vld [vmem:[%s2 + $0xac] sm:$0xf]
  %v118 = vld [vmem:[%s2 + $0xb0] sm:$0xf]
  %v119 = vld [vmem:[%s2 + $0xb4] sm:$0xf]
  %v120 = vld [vmem:[%s2 + $0xb8] sm:$0xf]
  %v121 = vld [vmem:[%s2 + $0xbc] sm:$0xf]
  %v122 = vld [vmem:[%s2 + $0xc0] sm:$0xf]
  %v123 = vld [vmem:[%s2 + $0xc4] sm:$0xf]
  %v124 = vld [vmem:[%s2 + $0xc8] sm:$0xf]
  %v125 = vld [vmem:[%s2 + $0xcc] sm:$0xf]
  %v126 = vld [vmem:[%s2 + $0xd0] sm:$0xf]
  %v127 = vld [vmem:[%s2 + $0xd4] sm:$0xf]
  %v128 = vld [vmem:[%s2 + $0xd8] sm:$0xf]
  %v129 = vld [vmem:[%s2 + $0xdc] sm:$0xf]
  %v130 = vld [vmem:[%s2 + $0xe0] sm:$0xf]
  %v131 = vld [vmem:[%s2 + $0xe4] sm:$0xf]
  %v132 = vld [vmem:[%s2 + $0xe8] sm:$0xf]
  %v133 = vld [vmem:[%s2 + $0xec] sm:$0xf]
  %v134 = vld [vmem:[%s2 + $0xf0] sm:$0xf]
  %v135 = vld [vmem:[%s2 + $0xf4] sm:$0xf]
  %v136 = vld [vmem:[%s2 + $0xf8] sm:$0xf]
  %v137 = vld [vmem:[%s2 + $0xfc] sm:$0xf]
  %v202 = vunpack.c.l.b16 %v74
  %v203 = vunpack.c.l.b16 %v75
  %v204 = vunpack.c.l.b16 %v76
  %v205 = vunpack.c.l.b16 %v77
  %v206 = vunpack.c.l.b16 %v78
  %v207 = vunpack.c.l.b16 %v79
  %v208 = vunpack.c.l.b16 %v80
  %v209 = vunpack.c.l.b16 %v81
  %v210 = vunpack.c.l.b16 %v82
  %v211 = vunpack.c.l.b16 %v83
  %v212 = vunpack.c.l.b16 %v84
  %v213 = vunpack.c.l.b16 %v85
  %v214 = vunpack.c.l.b16 %v86
  %v215 = vunpack.c.l.b16 %v87
  %v216 = vunpack.c.l.b16 %v88
  %v217 = vunpack.c.l.b16 %v89
  %v218 = vunpack.c.l.b16 %v90
  %v219 = vunpack.c.l.b16 %v91
  %v220 = vunpack.c.l.b16 %v92
  %v221 = vunpack.c.l.b16 %v93
  %v222 = vunpack.c.l.b16 %v94
  %v223 = vunpack.c.l.b16 %v95
  %v224 = vunpack.c.l.b16 %v96
  %v225 = vunpack.c.l.b16 %v97
  %v226 = vunpack.c.l.b16 %v98
  %v227 = vunpack.c.l.b16 %v99
  %v228 = vunpack.c.l.b16 %v100
  %v229 = vunpack.c.l.b16 %v101
  %v230 = vunpack.c.l.b16 %v102
  %v231 = vunpack.c.l.b16 %v103
  %v232 = vunpack.c.l.b16 %v104
  %v233 = vunpack.c.l.b16 %v105
  %v234 = vunpack.c.l.b16 %v106
  %v235 = vunpack.c.l.b16 %v107
  %v236 = vunpack.c.l.b16 %v108
  %v237 = vunpack.c.l.b16 %v109
  %v238 = vunpack.c.l.b16 %v110
  %v239 = vunpack.c.l.b16 %v111
  %v240 = vunpack.c.l.b16 %v112
  %v241 = vunpack.c.l.b16 %v113
  %v242 = vunpack.c.l.b16 %v114
  %v243 = vunpack.c.l.b16 %v115
  %v244 = vunpack.c.l.b16 %v116
  %v245 = vunpack.c.l.b16 %v117
  %v246 = vunpack.c.l.b16 %v118
  %v247 = vunpack.c.l.b16 %v119
  %v248 = vunpack.c.l.b16 %v120
  %v249 = vunpack.c.l.b16 %v121
  %v250 = vunpack.c.l.b16 %v122
  %v251 = vunpack.c.l.b16 %v123
  %v252 = vunpack.c.l.b16 %v124
  %v253 = vunpack.c.l.b16 %v125
  %v254 = vunpack.c.l.b16 %v126
  %v255 = vunpack.c.l.b16 %v127
  %v256 = vunpack.c.l.b16 %v128
  %v257 = vunpack.c.l.b16 %v129
  %v258 = vunpack.c.l.b16 %v130
  %v259 = vunpack.c.l.b16 %v131
  %v260 = vunpack.c.l.b16 %v132
  %v261 = vunpack.c.l.b16 %v133
  %v262 = vunpack.c.l.b16 %v134
  %v263 = vunpack.c.l.b16 %v135
  %v264 = vunpack.c.l.b16 %v136
  %v265 = vunpack.c.l.b16 %v137
  %v266 = vpack.c.b16 %v203, %v202
  %v267 = vpack.c.b16 %v205, %v204
  %v268 = vpack.c.b16 %v207, %v206
  %v269 = vpack.c.b16 %v209, %v208
  %v270 = vpack.c.b16 %v211, %v210
  %v271 = vpack.c.b16 %v213, %v212
  %v272 = vpack.c.b16 %v215, %v214
  %v273 = vpack.c.b16 %v217, %v216
  %v274 = vpack.c.b16 %v219, %v218
  %v275 = vpack.c.b16 %v221, %v220
  %v276 = vpack.c.b16 %v223, %v222
  %v277 = vpack.c.b16 %v225, %v224
  %v278 = vpack.c.b16 %v227, %v226
  %v279 = vpack.c.b16 %v229, %v228
  %v280 = vpack.c.b16 %v231, %v230
  %v281 = vpack.c.b16 %v233, %v232
  %v282 = vpack.c.b16 %v235, %v234
  %v283 = vpack.c.b16 %v237, %v236
  %v284 = vpack.c.b16 %v239, %v238
  %v285 = vpack.c.b16 %v241, %v240
  %v286 = vpack.c.b16 %v243, %v242
  %v287 = vpack.c.b16 %v245, %v244
  %v288 = vpack.c.b16 %v247, %v246
  %v289 = vpack.c.b16 %v249, %v248
  %v290 = vpack.c.b16 %v251, %v250
  %v291 = vpack.c.b16 %v253, %v252
  %v292 = vpack.c.b16 %v255, %v254
  %v293 = vpack.c.b16 %v257, %v256
  %v294 = vpack.c.b16 %v259, %v258
  %v295 = vpack.c.b16 %v261, %v260
  %v296 = vpack.c.b16 %v263, %v262
  %v297 = vpack.c.b16 %v265, %v264
  %330 = vmatpush.bf16.msra.mxu0 %v273
  %331 = vmatpush.bf16.msra.mxu0 %v272
  %332 = vmatpush.bf16.msra.mxu0 %v271
  %333 = vmatpush.bf16.msra.mxu0 %v270
  %334 = vmatpush.bf16.msra.mxu0 %v269
  %335 = vmatpush.bf16.msra.mxu0 %v268
  %336 = vmatpush.bf16.msra.mxu0 %v267
  %337 = vmatpush.bf16.msra.mxu0 %v266
  %338 = vmatmul.bf16.gmra.mxu0 %v66
  %v339 = vpop.f32.mrf.mxu0
  %v340 = vadd.f32 0.0, %v339
  %v341 = vpop.f32.mrf.mxu0
  %v342 = vadd.f32 0.0, %v341
  %343 = vmatmul.bf16.gmra.mxu0 %v70
  %v344 = vpop.f32.mrf.mxu0
  %v345 = vadd.f32 0.0, %v344
  %v346 = vpop.f32.mrf.mxu0
  %v347 = vadd.f32 0.0, %v346
  %348 = vdwg.mxu0
  %349 = vmatpush.bf16.msra.mxu0 %v281
  %350 = vmatpush.bf16.msra.mxu0 %v280
  %351 = vmatpush.bf16.msra.mxu0 %v279
  %352 = vmatpush.bf16.msra.mxu0 %v278
  %353 = vmatpush.bf16.msra.mxu0 %v277
  %354 = vmatpush.bf16.msra.mxu0 %v276
  %355 = vmatpush.bf16.msra.mxu0 %v275
  %356 = vmatpush.bf16.msra.mxu0 %v274
  %357 = vmatmul.bf16.gmra.mxu0 %v67
  %v358 = vpop.f32.mrf.mxu0
  %v359 = vadd.f32 %v340, %v358
  %v360 = vpop.f32.mrf.mxu0
  %v361 = vadd.f32 %v342, %v360
  %362 = vmatmul.bf16.gmra.mxu0 %v71
  %v363 = vpop.f32.mrf.mxu0
  %v364 = vadd.f32 %v345, %v363
  %v365 = vpop.f32.mrf.mxu0
  %v366 = vadd.f32 %v347, %v365
  %367 = vdwg.mxu0
  %368 = vmatpush.bf16.msra.mxu0 %v289
  %369 = vmatpush.bf16.msra.mxu0 %v288
  %370 = vmatpush.bf16.msra.mxu0 %v287
  %371 = vmatpush.bf16.msra.mxu0 %v286
  %372 = vmatpush.bf16.msra.mxu0 %v285
  %373 = vmatpush.bf16.msra.mxu0 %v284
  %374 = vmatpush.bf16.msra.mxu0 %v283
  %375 = vmatpush.bf16.msra.mxu0 %v282
  %376 = vmatmul.bf16.gmra.mxu0 %v68
  %v377 = vpop.f32.mrf.mxu0
  %v378 = vadd.f32 %v359, %v377
  %v379 = vpop.f32.mrf.mxu0
  %v380 = vadd.f32 %v361, %v379
  %381 = vmatmul.bf16.gmra.mxu0 %v72
  %v382 = vpop.f32.mrf.mxu0
  %v383 = vadd.f32 %v364, %v382
  %v384 = vpop.f32.mrf.mxu0
  %v385 = vadd.f32 %v366, %v384
  %386 = vdwg.mxu0
  %387 = vmatpush.bf16.msra.mxu0 %v297
  %388 = vmatpush.bf16.msra.mxu0 %v296
  %389 = vmatpush.bf16.msra.mxu0 %v295
  %390 = vmatpush.bf16.msra.mxu0 %v294
  %391 = vmatpush.bf16.msra.mxu0 %v293
  %392 = vmatpush.bf16.msra.mxu0 %v292
  %393 = vmatpush.bf16.msra.mxu0 %v291
  %394 = vmatpush.bf16.msra.mxu0 %v290
  %395 = vmatmul.bf16.gmra.mxu0 %v69
  %v396 = vpop.f32.mrf.mxu0
  %v397 = vadd.f32 %v378, %v396
  %v398 = vpop.f32.mrf.mxu0
  %v399 = vadd.f32 %v380, %v398
  %400 = vmatmul.bf16.gmra.mxu0 %v73
  %v401 = vpop.f32.mrf.mxu0
  %v402 = vadd.f32 %v383, %v401
  %v403 = vpop.f32.mrf.mxu0
  %v404 = vadd.f32 %v385, %v403
  %405 = vdwg.mxu0
  %v406 = vld [vmem:[%s11] sm:$0xff]
  %v407 = vld [vmem:[%s11 + $0x8] sm:$0xff]
  %v408 = vld [vmem:[%s11 + $0x10] sm:$0xff]
  %v409 = vld [vmem:[%s11 + $0x18] sm:$0xff]
  %v410 = vld [vmem:[%s11 + $0x20] sm:$0xff]
  %v411 = vld [vmem:[%s11 + $0x28] sm:$0xff]
  %v412 = vld [vmem:[%s11 + $0x30] sm:$0xff]
  %v413 = vld [vmem:[%s11 + $0x38] sm:$0xff]
  %v414 = vld [vmem:[%s11 + $0x40] sm:$0xff]
  %v415 = vld [vmem:[%s11 + $0x48] sm:$0xff]
  %v416 = vld [vmem:[%s11 + $0x50] sm:$0xff]
  %v417 = vld [vmem:[%s11 + $0x58] sm:$0xff]
  %v418 = vld [vmem:[%s11 + $0x60] sm:$0xff]
  %v419 = vld [vmem:[%s11 + $0x68] sm:$0xff]
  %v420 = vld [vmem:[%s11 + $0x70] sm:$0xff]
  %v421 = vld [vmem:[%s11 + $0x78] sm:$0xff]
  %vm422 = vcmask 261120
  %v424 = vsel %vm422, 1.0, 0
  %426 = vmatpush.msra.mxu0 0.0
  %427 = vmatpush.msra.mxu0 0.0
  %428 = vmatpush.msra.mxu0 0.0
  %429 = vmatpush.msra.mxu0 0.0
  %430 = vmatpush.msra.mxu0 0.0
  %431 = vmatpush.msra.mxu0 0.0
  %432 = vmatpush.msra.mxu0 0.0
  %433 = vmatpush.msra.mxu0 0.0
  %434 = vmatpush.msra.mxu0 0.0
  %435 = vmatpush.msra.mxu0 0.0
  %436 = vmatpush.msra.mxu0 0.0
  %437 = vmatpush.msra.mxu0 0.0
  %438 = vmatpush.msra.mxu0 %v404
  %439 = vmatpush.msra.mxu0 %v402
  %440 = vmatpush.msra.mxu0 %v399
  %441 = vmatpush.msra.mxu0 %v397
  %442 = vmatmul.f32.gmra.mxu0 %v424
  %v443 = vpop.f32.mrf.mxu0
  %v444 = vadd.f32 0.0, %v443
  %445 = vdwg.mxu0
  %v446 = vmul.f32 %v397, %v397
  %v447 = vmul.f32 %v399, %v399
  %v448 = vmul.f32 %v402, %v402
  %v449 = vmul.f32 %v404, %v404
  %450 = vmatpush.msra.mxu0 0.0
  %451 = vmatpush.msra.mxu0 0.0
  %452 = vmatpush.msra.mxu0 0.0
  %453 = vmatpush.msra.mxu0 0.0
  %454 = vmatpush.msra.mxu0 0.0
  %455 = vmatpush.msra.mxu0 0.0
  %456 = vmatpush.msra.mxu0 0.0
  %457 = vmatpush.msra.mxu0 0.0
  %458 = vmatpush.msra.mxu0 0.0
  %459 = vmatpush.msra.mxu0 0.0
  %460 = vmatpush.msra.mxu0 0.0
  %461 = vmatpush.msra.mxu0 0.0
  %462 = vmatpush.msra.mxu0 %v449
  %463 = vmatpush.msra.mxu0 %v448
  %464 = vmatpush.msra.mxu0 %v447
  %465 = vmatpush.msra.mxu0 %v446
  %466 = vmatmul.f32.gmra.mxu0 %v424
  %v467 = vpop.f32.mrf.mxu0
  %v468 = vadd.f32 0.0, %v467
  %469 = vdwg.mxu0
  %470 = vmatpush.msra.mxu0 %v421
  %471 = vmatpush.msra.mxu0 %v420
  %472 = vmatpush.msra.mxu0 %v419
  %473 = vmatpush.msra.mxu0 %v418
  %474 = vmatpush.msra.mxu0 %v417
  %475 = vmatpush.msra.mxu0 %v416
  %476 = vmatpush.msra.mxu0 %v415
  %477 = vmatpush.msra.mxu0 %v414
  %478 = vmatpush.msra.mxu0 %v413
  %479 = vmatpush.msra.mxu0 %v412
  %480 = vmatpush.msra.mxu0 %v411
  %481 = vmatpush.msra.mxu0 %v410
  %482 = vmatpush.msra.mxu0 %v409
  %483 = vmatpush.msra.mxu0 %v408
  %484 = vmatpush.msra.mxu0 %v407
  %485 = vmatpush.msra.mxu0 %v406
  %486 = vmatmul.f32.gmra.mxu0 %v444
  %v487 = vpop.f32.mrf.mxu0
  %v488 = vadd.f32 0.0, %v487
  %489 = vdwg.mxu0
  %490 = vmatpush.msra.mxu0 %v421
  %491 = vmatpush.msra.mxu0 %v420
  %492 = vmatpush.msra.mxu0 %v419
  %493 = vmatpush.msra.mxu0 %v418
  %494 = vmatpush.msra.mxu0 %v417
  %495 = vmatpush.msra.mxu0 %v416
  %496 = vmatpush.msra.mxu0 %v415
  %497 = vmatpush.msra.mxu0 %v414
  %498 = vmatpush.msra.mxu0 %v413
  %499 = vmatpush.msra.mxu0 %v412
  %500 = vmatpush.msra.mxu0 %v411
  %501 = vmatpush.msra.mxu0 %v410
  %502 = vmatpush.msra.mxu0 %v409
  %503 = vmatpush.msra.mxu0 %v408
  %504 = vmatpush.msra.mxu0 %v407
  %505 = vmatpush.msra.mxu0 %v406
  %506 = vmatmul.f32.gmra.mxu0 %v468
  %v507 = vpop.f32.mrf.mxu0
  %v508 = vadd.f32 0.0, %v507
  %509 = vdwg.mxu0
  %v510 = vrcp.pop 512.0
  %v511 = vmul.f32 512.0, %v510
  %v512 = vsub.f32 1.0, %v511
  %v513 = vmul.f32 %v510, %v512
  %v514 = vadd.f32 %v510, %v513
  %vm515 = vweird.f32 %v510
  %v516 = vsel %vm515, %v510, %v514
  %v517 = vmul.f32 %v488, %v516
  %v518 = vmul.f32 %v508, %v516
  %v519 = vmul.f32 %v517, %v517
  %v520 = vsub.f32 %v518, %v519
  %v521 = vld [vmem:[%s3] sm:$0x1]
  %v522 = vadd.f32 %v520, 1e-05
  %v523 = vrsqrt.pop %v522
  %v524 = vmul.f32 %v523, %v522
  %v525 = vmul.f32 %v524, %v523
  %v526 = vmul.f32 0.5, %v525
  %v527 = vsub.f32 1.5, %v526
  %v528 = vmul.f32 %v523, %v527
  %vm529 = vweird.f32 %v522
  %vm530 = vweird.f32 %v523
  %vm531 = vmor %vm529, %vm530
  %v532 = vsel %vm531, %v523, %v528
  %v533 = vmul.f32 %v521, %v532
  %v534 = vld [vmem:[%s4] sm:$0x1]
  %v535 = vmul.f32 %v517, %v533
  %v536 = vsub.f32 %v534, %v535
  %v537 = vld [vmem:[%s12] sm:$0xff]
  %vm538 = vcmask 64512
  %v540 = vsel %vm538, %v533, 0
  %542 = vmatpush.msra.mxu0 0.0
  %543 = vmatpush.msra.mxu0 0.0
  %544 = vmatpush.msra.mxu0 0.0
  %545 = vmatpush.msra.mxu0 0.0
  %546 = vmatpush.msra.mxu0 0.0
  %547 = vmatpush.msra.mxu0 0.0
  %548 = vmatpush.msra.mxu0 0.0
  %549 = vmatpush.msra.mxu0 0.0
  %550 = vmatpush.msra.mxu0 0.0
  %551 = vmatpush.msra.mxu0 0.0
  %552 = vmatpush.msra.mxu0 0.0
  %553 = vmatpush.msra.mxu0 0.0
  %554 = vmatpush.msra.mxu0 0.0
  %555 = vmatpush.msra.mxu0 0.0
  %556 = vmatpush.msra.mxu0 0.0
  %557 = vmatpush.msra.mxu0 %v537
  %558 = vmatmul.f32.gmra.mxu0 %v540
  %v559 = vpop.f32.mrf.mxu0
  %v560 = vadd.f32 0.0, %v559
  %561 = vdwg.mxu0
  %v563 = vsel %vm538, %v536, 0
  %565 = vmatpush.msra.mxu0 0.0
  %566 = vmatpush.msra.mxu0 0.0
  %567 = vmatpush.msra.mxu0 0.0
  %568 = vmatpush.msra.mxu0 0.0
  %569 = vmatpush.msra.mxu0 0.0
  %570 = vmatpush.msra.mxu0 0.0
  %571 = vmatpush.msra.mxu0 0.0
  %572 = vmatpush.msra.mxu0 0.0
  %573 = vmatpush.msra.mxu0 0.0
  %574 = vmatpush.msra.mxu0 0.0
  %575 = vmatpush.msra.mxu0 0.0
  %576 = vmatpush.msra.mxu0 0.0
  %577 = vmatpush.msra.mxu0 0.0
  %578 = vmatpush.msra.mxu0 0.0
  %579 = vmatpush.msra.mxu0 0.0
  %580 = vmatpush.msra.mxu0 %v537
  %581 = vmatmul.f32.gmra.mxu0 %v563
  %v582 = vpop.f32.mrf.mxu0
  %v583 = vadd.f32 0.0, %v582
  %584 = vdwg.mxu0
  %v585 = vperm.slane %v560, 0
  %v586 = vmul.f32 %v397, %v585
  %v587 = vmul.f32 %v399, %v585
  %v588 = vmul.f32 %v402, %v585
  %v589 = vmul.f32 %v404, %v585
  %v590 = vperm.slane %v583, 0
  %v591 = vadd.f32 %v586, %v590
  %v592 = vadd.f32 %v587, %v590
  %v593 = vadd.f32 %v588, %v590
  %v594 = vadd.f32 %v589, %v590
  %v595 = vmax.f32 %v591, 0.0
  %v596 = vmax.f32 %v592, 0.0
  %v597 = vmax.f32 %v593, 0.0
  %v598 = vmax.f32 %v594, 0.0
  %599 = vst [vmem:[#allocation2 + $0x8] sm:$0xff] %v595
  %600 = vst [vmem:[#allocation2 + $0x10] sm:$0xff] %v596
  %601 = vst [vmem:[#allocation2 + $0x18] sm:$0xff] %v597
  %602 = vst [vmem:[#allocation2 + $0x20] sm:$0xff] %v598
  %v603 = vld [vmem:[%s0] sm:$0xff]
  %v604 = vld [vmem:[%s0 + $0x8] sm:$0xff]
  %v605 = vld [vmem:[%s0 + $0x10] sm:$0xff]
  %v606 = vld [vmem:[%s0 + $0x18] sm:$0xff]
  %vm607 = vcmp.ge.s32.totalorder %v603, 1
  %vm608 = vcmp.ge.s32.totalorder %v604, 1
  %vm609 = vcmp.ge.s32.totalorder %v605, 1
  %vm610 = vcmp.ge.s32.totalorder %v606, 1
  %v611 = vld [vmem:[#allocation2 + $0x7] sm:$0xff]
  %v612 = vld [vmem:[#allocation2 + $0xf] sm:$0xff]
  %v613 = vld [vmem:[#allocation2 + $0x17] sm:$0xff]
  %v614 = vld [vmem:[#allocation2 + $0x1f] sm:$0xff]
  %v615 = vsel %vm607, 1, 0
  %v616 = vsel %vm608, 1, 0
  %v617 = vsel %vm609, 1, 0
  %v618 = vsel %vm610, 1, 0
  %619 = vset.pattern.permute.xlu0 0
  %620 = vperm.xlu0 %619, %v615
  %v621 = vpop.permute.xlu0 %620
  %622 = vset.pattern.permute.xlu0 0
  %623 = vperm.xlu0 %622, %v616
  %v624 = vpop.permute.xlu0 %623
  %625 = vset.pattern.permute.xlu0 0
  %626 = vperm.xlu0 %625, %v617
  %v627 = vpop.permute.xlu0 %626
  %628 = vset.pattern.permute.xlu0 0
  %629 = vperm.xlu0 %628, %v618
  %v630 = vpop.permute.xlu0 %629
  %vm631 = vcmp.eq.s32.totalorder %v621, 1
  %vm632 = vcmp.eq.s32.totalorder %v624, 1
  %vm633 = vcmp.eq.s32.totalorder %v627, 1
  %vm634 = vcmp.eq.s32.totalorder %v630, 1
  %v635 = vsel %vm631, %v611, 0.0
  %v636 = vsel %vm632, %v612, 0.0
  %v637 = vsel %vm633, %v613, 0.0
  %v638 = vsel %vm634, %v614, 0.0
  %vm639 = vcmp.le.s32.totalorder %v603, 14
  %vm640 = vcmp.le.s32.totalorder %v604, 14
  %vm641 = vcmp.le.s32.totalorder %v605, 14
  %vm642 = vcmp.le.s32.totalorder %v606, 14
  %v643 = vld [vmem:[#allocation2 + $0x9] sm:$0xff]
  %v644 = vld [vmem:[#allocation2 + $0x11] sm:$0xff]
  %v645 = vld [vmem:[#allocation2 + $0x19] sm:$0xff]
  %v646 = vld [vmem:[#allocation2 + $0x21] sm:$0xff]
  %v647 = vsel %vm639, 1, 0
  %v648 = vsel %vm640, 1, 0
  %v649 = vsel %vm641, 1, 0
  %v650 = vsel %vm642, 1, 0
  %651 = vset.pattern.permute.xlu0 0
  %652 = vperm.xlu0 %651, %v647
  %v653 = vpop.permute.xlu0 %652
  %654 = vset.pattern.permute.xlu0 0
  %655 = vperm.xlu0 %654, %v648
  %v656 = vpop.permute.xlu0 %655
  %657 = vset.pattern.permute.xlu0 0
  %658 = vperm.xlu0 %657, %v649
  %v659 = vpop.permute.xlu0 %658
  %660 = vset.pattern.permute.xlu0 0
  %661 = vperm.xlu0 %660, %v650
  %v662 = vpop.permute.xlu0 %661
  %vm663 = vcmp.eq.s32.totalorder %v653, 1
  %vm664 = vcmp.eq.s32.totalorder %v656, 1
  %vm665 = vcmp.eq.s32.totalorder %v659, 1
  %vm666 = vcmp.eq.s32.totalorder %v662, 1
  %v667 = vsel %vm663, %v643, 0.0
  %v668 = vsel %vm664, %v644, 0.0
  %v669 = vsel %vm665, %v645, 0.0
  %v670 = vsel %vm666, %v646, 0.0
  %v671 = vpack.c.bf16 %v636, %v635
  %v672 = vpack.c.bf16 %v596, %v595
  %v673 = vpack.c.bf16 %v668, %v667
  %v674 = vpack.c.bf16 %v638, %v637
  %v675 = vpack.c.bf16 %v598, %v597
  %v676 = vpack.c.bf16 %v670, %v669
  %v677 = vld [vmem:[%s5] sm:$0xf]
  %v678 = vld [vmem:[%s5 + $0x4] sm:$0xf]
  %v679 = vld [vmem:[%s5 + $0x8] sm:$0xf]
  %v680 = vld [vmem:[%s5 + $0xc] sm:$0xf]
  %v681 = vld [vmem:[%s5 + $0x10] sm:$0xf]
  %v682 = vld [vmem:[%s5 + $0x14] sm:$0xf]
  %v683 = vld [vmem:[%s5 + $0x18] sm:$0xf]
  %v684 = vld [vmem:[%s5 + $0x1c] sm:$0xf]
  %v685 = vld [vmem:[%s5 + $0x20] sm:$0xf]
  %v686 = vld [vmem:[%s5 + $0x24] sm:$0xf]
  %v687 = vld [vmem:[%s5 + $0x28] sm:$0xf]
  %v688 = vld [vmem:[%s5 + $0x2c] sm:$0xf]
  %v689 = vld [vmem:[%s5 + $0x30] sm:$0xf]
  %v690 = vld [vmem:[%s5 + $0x34] sm:$0xf]
  %v691 = vld [vmem:[%s5 + $0x38] sm:$0xf]
  %v692 = vld [vmem:[%s5 + $0x3c] sm:$0xf]
  %v693 = vld [vmem:[%s5 + $0x40] sm:$0xf]
  %v694 = vld [vmem:[%s5 + $0x44] sm:$0xf]
  %v695 = vld [vmem:[%s5 + $0x48] sm:$0xf]
  %v696 = vld [vmem:[%s5 + $0x4c] sm:$0xf]
  %v697 = vld [vmem:[%s5 + $0x50] sm:$0xf]
  %v698 = vld [vmem:[%s5 + $0x54] sm:$0xf]
  %v699 = vld [vmem:[%s5 + $0x58] sm:$0xf]
  %v700 = vld [vmem:[%s5 + $0x5c] sm:$0xf]
  %v701 = vld [vmem:[%s5 + $0x60] sm:$0xf]
  %v702 = vld [vmem:[%s5 + $0x64] sm:$0xf]
  %v703 = vld [vmem:[%s5 + $0x68] sm:$0xf]
  %v704 = vld [vmem:[%s5 + $0x6c] sm:$0xf]
  %v705 = vld [vmem:[%s5 + $0x70] sm:$0xf]
  %v706 = vld [vmem:[%s5 + $0x74] sm:$0xf]
  %v707 = vld [vmem:[%s5 + $0x78] sm:$0xf]
  %v708 = vld [vmem:[%s5 + $0x7c] sm:$0xf]
  %v709 = vld [vmem:[%s5 + $0x80] sm:$0xf]
  %v710 = vld [vmem:[%s5 + $0x84] sm:$0xf]
  %v711 = vld [vmem:[%s5 + $0x88] sm:$0xf]
  %v712 = vld [vmem:[%s5 + $0x8c] sm:$0xf]
  %v713 = vld [vmem:[%s5 + $0x90] sm:$0xf]
  %v714 = vld [vmem:[%s5 + $0x94] sm:$0xf]
  %v715 = vld [vmem:[%s5 + $0x98] sm:$0xf]
  %v716 = vld [vmem:[%s5 + $0x9c] sm:$0xf]
  %v717 = vld [vmem:[%s5 + $0xa0] sm:$0xf]
  %v718 = vld [vmem:[%s5 + $0xa4] sm:$0xf]
  %v719 = vld [vmem:[%s5 + $0xa8] sm:$0xf]
  %v720 = vld [vmem:[%s5 + $0xac] sm:$0xf]
  %v721 = vld [vmem:[%s5 + $0xb0] sm:$0xf]
  %v722 = vld [vmem:[%s5 + $0xb4] sm:$0xf]
  %v723 = vld [vmem:[%s5 + $0xb8] sm:$0xf]
  %v724 = vld [vmem:[%s5 + $0xbc] sm:$0xf]
  %v773 = vunpack.c.l.b16 %v677
  %v774 = vunpack.c.l.b16 %v678
  %v775 = vunpack.c.l.b16 %v679
  %v776 = vunpack.c.l.b16 %v680
  %v777 = vunpack.c.l.b16 %v681
  %v778 = vunpack.c.l.b16 %v682
  %v779 = vunpack.c.l.b16 %v683
  %v780 = vunpack.c.l.b16 %v684
  %v781 = vunpack.c.l.b16 %v685
  %v782 = vunpack.c.l.b16 %v686
  %v783 = vunpack.c.l.b16 %v687
  %v784 = vunpack.c.l.b16 %v688
  %v785 = vunpack.c.l.b16 %v689
  %v786 = vunpack.c.l.b16 %v690
  %v787 = vunpack.c.l.b16 %v691
  %v788 = vunpack.c.l.b16 %v692
  %v789 = vunpack.c.l.b16 %v693
  %v790 = vunpack.c.l.b16 %v694
  %v791 = vunpack.c.l.b16 %v695
  %v792 = vunpack.c.l.b16 %v696
  %v793 = vunpack.c.l.b16 %v697
  %v794 = vunpack.c.l.b16 %v698
  %v795 = vunpack.c.l.b16 %v699
  %v796 = vunpack.c.l.b16 %v700
  %v797 = vunpack.c.l.b16 %v701
  %v798 = vunpack.c.l.b16 %v702
  %v799 = vunpack.c.l.b16 %v703
  %v800 = vunpack.c.l.b16 %v704
  %v801 = vunpack.c.l.b16 %v705
  %v802 = vunpack.c.l.b16 %v706
  %v803 = vunpack.c.l.b16 %v707
  %v804 = vunpack.c.l.b16 %v708
  %v805 = vunpack.c.l.b16 %v709
  %v806 = vunpack.c.l.b16 %v710
  %v807 = vunpack.c.l.b16 %v711
  %v808 = vunpack.c.l.b16 %v712
  %v809 = vunpack.c.l.b16 %v713
  %v810 = vunpack.c.l.b16 %v714
  %v811 = vunpack.c.l.b16 %v715
  %v812 = vunpack.c.l.b16 %v716
  %v813 = vunpack.c.l.b16 %v717
  %v814 = vunpack.c.l.b16 %v718
  %v815 = vunpack.c.l.b16 %v719
  %v816 = vunpack.c.l.b16 %v720
  %v817 = vunpack.c.l.b16 %v721
  %v818 = vunpack.c.l.b16 %v722
  %v819 = vunpack.c.l.b16 %v723
  %v820 = vunpack.c.l.b16 %v724
  %v821 = vpack.c.b16 %v774, %v773
  %v822 = vpack.c.b16 %v776, %v775
  %v823 = vpack.c.b16 %v778, %v777
  %v824 = vpack.c.b16 %v780, %v779
  %v825 = vpack.c.b16 %v782, %v781
  %v826 = vpack.c.b16 %v784, %v783
  %v827 = vpack.c.b16 %v786, %v785
  %v828 = vpack.c.b16 %v788, %v787
  %v829 = vpack.c.b16 %v790, %v789
  %v830 = vpack.c.b16 %v792, %v791
  %v831 = vpack.c.b16 %v794, %v793
  %v832 = vpack.c.b16 %v796, %v795
  %v833 = vpack.c.b16 %v798, %v797
  %v834 = vpack.c.b16 %v800, %v799
  %v835 = vpack.c.b16 %v802, %v801
  %v836 = vpack.c.b16 %v804, %v803
  %v837 = vpack.c.b16 %v806, %v805
  %v838 = vpack.c.b16 %v808, %v807
  %v839 = vpack.c.b16 %v810, %v809
  %v840 = vpack.c.b16 %v812, %v811
  %v841 = vpack.c.b16 %v814, %v813
  %v842 = vpack.c.b16 %v816, %v815
  %v843 = vpack.c.b16 %v818, %v817
  %v844 = vpack.c.b16 %v820, %v819
  %869 = vmatpush.bf16.msra.mxu0 %v828
  %870 = vmatpush.bf16.msra.mxu0 %v827
  %871 = vmatpush.bf16.msra.mxu0 %v826
  %872 = vmatpush.bf16.msra.mxu0 %v825
  %873 = vmatpush.bf16.msra.mxu0 %v824
  %874 = vmatpush.bf16.msra.mxu0 %v823
  %875 = vmatpush.bf16.msra.mxu0 %v822
  %876 = vmatpush.bf16.msra.mxu0 %v821
  %877 = vmatmul.bf16.gmra.mxu0 %v671
  %v878 = vpop.f32.mrf.mxu0
  %v879 = vadd.f32 0.0, %v878
  %v880 = vpop.f32.mrf.mxu0
  %v881 = vadd.f32 0.0, %v880
  %882 = vmatmul.bf16.gmra.mxu0 %v674
  %v883 = vpop.f32.mrf.mxu0
  %v884 = vadd.f32 0.0, %v883
  %v885 = vpop.f32.mrf.mxu0
  %v886 = vadd.f32 0.0, %v885
  %887 = vdwg.mxu0
  %888 = vmatpush.bf16.msra.mxu0 %v836
  %889 = vmatpush.bf16.msra.mxu0 %v835
  %890 = vmatpush.bf16.msra.mxu0 %v834
  %891 = vmatpush.bf16.msra.mxu0 %v833
  %892 = vmatpush.bf16.msra.mxu0 %v832
  %893 = vmatpush.bf16.msra.mxu0 %v831
  %894 = vmatpush.bf16.msra.mxu0 %v830
  %895 = vmatpush.bf16.msra.mxu0 %v829
  %896 = vmatmul.bf16.gmra.mxu0 %v672
  %v897 = vpop.f32.mrf.mxu0
  %v898 = vadd.f32 %v879, %v897
  %v899 = vpop.f32.mrf.mxu0
  %v900 = vadd.f32 %v881, %v899
  %901 = vmatmul.bf16.gmra.mxu0 %v675
  %v902 = vpop.f32.mrf.mxu0
  %v903 = vadd.f32 %v884, %v902
  %v904 = vpop.f32.mrf.mxu0
  %v905 = vadd.f32 %v886, %v904
  %906 = vdwg.mxu0
  %907 = vmatpush.bf16.msra.mxu0 %v844
  %908 = vmatpush.bf16.msra.mxu0 %v843
  %909 = vmatpush.bf16.msra.mxu0 %v842
  %910 = vmatpush.bf16.msra.mxu0 %v841
  %911 = vmatpush.bf16.msra.mxu0 %v840
  %912 = vmatpush.bf16.msra.mxu0 %v839
  %913 = vmatpush.bf16.msra.mxu0 %v838
  %914 = vmatpush.bf16.msra.mxu0 %v837
  %915 = vmatmul.bf16.gmra.mxu0 %v673
  %v916 = vpop.f32.mrf.mxu0
  %v917 = vadd.f32 %v898, %v916
  %v918 = vpop.f32.mrf.mxu0
  %v919 = vadd.f32 %v900, %v918
  %920 = vmatmul.bf16.gmra.mxu0 %v676
  %v921 = vpop.f32.mrf.mxu0
  %v922 = vadd.f32 %v903, %v921
  %v923 = vpop.f32.mrf.mxu0
  %v924 = vadd.f32 %v905, %v923
  %925 = vdwg.mxu0
  %v926 = vld [vmem:[%s11] sm:$0xff]
  %v927 = vld [vmem:[%s11 + $0x8] sm:$0xff]
  %v928 = vld [vmem:[%s11 + $0x10] sm:$0xff]
  %v929 = vld [vmem:[%s11 + $0x18] sm:$0xff]
  %v930 = vld [vmem:[%s11 + $0x20] sm:$0xff]
  %v931 = vld [vmem:[%s11 + $0x28] sm:$0xff]
  %v932 = vld [vmem:[%s11 + $0x30] sm:$0xff]
  %v933 = vld [vmem:[%s11 + $0x38] sm:$0xff]
  %v934 = vld [vmem:[%s11 + $0x40] sm:$0xff]
  %v935 = vld [vmem:[%s11 + $0x48] sm:$0xff]
  %v936 = vld [vmem:[%s11 + $0x50] sm:$0xff]
  %v937 = vld [vmem:[%s11 + $0x58] sm:$0xff]
  %v938 = vld [vmem:[%s11 + $0x60] sm:$0xff]
  %v939 = vld [vmem:[%s11 + $0x68] sm:$0xff]
  %v940 = vld [vmem:[%s11 + $0x70] sm:$0xff]
  %v941 = vld [vmem:[%s11 + $0x78] sm:$0xff]
  %942 = vmatpush.msra.mxu0 0.0
  %943 = vmatpush.msra.mxu0 0.0
  %944 = vmatpush.msra.mxu0 0.0
  %945 = vmatpush.msra.mxu0 0.0
  %946 = vmatpush.msra.mxu0 0.0
  %947 = vmatpush.msra.mxu0 0.0
  %948 = vmatpush.msra.mxu0 0.0
  %949 = vmatpush.msra.mxu0 0.0
  %950 = vmatpush.msra.mxu0 0.0
  %951 = vmatpush.msra.mxu0 0.0
  %952 = vmatpush.msra.mxu0 0.0
  %953 = vmatpush.msra.mxu0 0.0
  %954 = vmatpush.msra.mxu0 %v924
  %955 = vmatpush.msra.mxu0 %v922
  %956 = vmatpush.msra.mxu0 %v919
  %957 = vmatpush.msra.mxu0 %v917
  %958 = vmatmul.f32.gmra.mxu0 %v424
  %v959 = vpop.f32.mrf.mxu0
  %v960 = vadd.f32 0.0, %v959
  %961 = vdwg.mxu0
  %v962 = vmul.f32 %v917, %v917
  %v963 = vmul.f32 %v919, %v919
  %v964 = vmul.f32 %v922, %v922
  %v965 = vmul.f32 %v924, %v924
  %966 = vmatpush.msra.mxu0 0.0
  %967 = vmatpush.msra.mxu0 0.0
  %968 = vmatpush.msra.mxu0 0.0
  %969 = vmatpush.msra.mxu0 0.0
  %970 = vmatpush.msra.mxu0 0.0
  %971 = vmatpush.msra.mxu0 0.0
  %972 = vmatpush.msra.mxu0 0.0
  %973 = vmatpush.msra.mxu0 0.0
  %974 = vmatpush.msra.mxu0 0.0
  %975 = vmatpush.msra.mxu0 0.0
  %976 = vmatpush.msra.mxu0 0.0
  %977 = vmatpush.msra.mxu0 0.0
  %978 = vmatpush.msra.mxu0 %v965
  %979 = vmatpush.msra.mxu0 %v964
  %980 = vmatpush.msra.mxu0 %v963
  %981 = vmatpush.msra.mxu0 %v962
  %982 = vmatmul.f32.gmra.mxu0 %v424
  %v983 = vpop.f32.mrf.mxu0
  %v984 = vadd.f32 0.0, %v983
  %985 = vdwg.mxu0
  %986 = vmatpush.msra.mxu0 %v941
  %987 = vmatpush.msra.mxu0 %v940
  %988 = vmatpush.msra.mxu0 %v939
  %989 = vmatpush.msra.mxu0 %v938
  %990 = vmatpush.msra.mxu0 %v937
  %991 = vmatpush.msra.mxu0 %v936
  %992 = vmatpush.msra.mxu0 %v935
  %993 = vmatpush.msra.mxu0 %v934
  %994 = vmatpush.msra.mxu0 %v933
  %995 = vmatpush.msra.mxu0 %v932
  %996 = vmatpush.msra.mxu0 %v931
  %997 = vmatpush.msra.mxu0 %v930
  %998 = vmatpush.msra.mxu0 %v929
  %999 = vmatpush.msra.mxu0 %v928
  %1000 = vmatpush.msra.mxu0 %v927
  %1001 = vmatpush.msra.mxu0 %v926
  %1002 = vmatmul.f32.gmra.mxu0 %v960
  %v1003 = vpop.f32.mrf.mxu0
  %v1004 = vadd.f32 0.0, %v1003
  %1005 = vdwg.mxu0
  %1006 = vmatpush.msra.mxu0 %v941
  %1007 = vmatpush.msra.mxu0 %v940
  %1008 = vmatpush.msra.mxu0 %v939
  %1009 = vmatpush.msra.mxu0 %v938
  %1010 = vmatpush.msra.mxu0 %v937
  %1011 = vmatpush.msra.mxu0 %v936
  %1012 = vmatpush.msra.mxu0 %v935
  %1013 = vmatpush.msra.mxu0 %v934
  %1014 = vmatpush.msra.mxu0 %v933
  %1015 = vmatpush.msra.mxu0 %v932
  %1016 = vmatpush.msra.mxu0 %v931
  %1017 = vmatpush.msra.mxu0 %v930
  %1018 = vmatpush.msra.mxu0 %v929
  %1019 = vmatpush.msra.mxu0 %v928
  %1020 = vmatpush.msra.mxu0 %v927
  %1021 = vmatpush.msra.mxu0 %v926
  %1022 = vmatmul.f32.gmra.mxu0 %v984
  %v1023 = vpop.f32.mrf.mxu0
  %v1024 = vadd.f32 0.0, %v1023
  %1025 = vdwg.mxu0
  %v1026 = vmul.f32 %v1004, %v516
  %v1027 = vmul.f32 %v1024, %v516
  %v1028 = vmul.f32 %v1026, %v1026
  %v1029 = vsub.f32 %v1027, %v1028
  %v1030 = vld [vmem:[%s6] sm:$0x1]
  %v1031 = vadd.f32 %v1029, 1e-05
  %v1032 = vrsqrt.pop %v1031
  %v1033 = vmul.f32 %v1032, %v1031
  %v1034 = vmul.f32 %v1033, %v1032
  %v1035 = vmul.f32 0.5, %v1034
  %v1036 = vsub.f32 1.5, %v1035
  %v1037 = vmul.f32 %v1032, %v1036
  %vm1038 = vweird.f32 %v1031
  %vm1039 = vweird.f32 %v1032
  %vm1040 = vmor %vm1038, %vm1039
  %v1041 = vsel %vm1040, %v1032, %v1037
  %v1042 = vmul.f32 %v1030, %v1041
  %v1043 = vld [vmem:[%s7] sm:$0x1]
  %v1044 = vmul.f32 %v1026, %v1042
  %v1045 = vsub.f32 %v1043, %v1044
  %v1046 = vld [vmem:[%s12] sm:$0xff]
  %v1048 = vsel %vm538, %v1042, 0
  %1050 = vmatpush.msra.mxu0 0.0
  %1051 = vmatpush.msra.mxu0 0.0
  %1052 = vmatpush.msra.mxu0 0.0
  %1053 = vmatpush.msra.mxu0 0.0
  %1054 = vmatpush.msra.mxu0 0.0
  %1055 = vmatpush.msra.mxu0 0.0
  %1056 = vmatpush.msra.mxu0 0.0
  %1057 = vmatpush.msra.mxu0 0.0
  %1058 = vmatpush.msra.mxu0 0.0
  %1059 = vmatpush.msra.mxu0 0.0
  %1060 = vmatpush.msra.mxu0 0.0
  %1061 = vmatpush.msra.mxu0 0.0
  %1062 = vmatpush.msra.mxu0 0.0
  %1063 = vmatpush.msra.mxu0 0.0
  %1064 = vmatpush.msra.mxu0 0.0
  %1065 = vmatpush.msra.mxu0 %v1046
  %1066 = vmatmul.f32.gmra.mxu0 %v1048
  %v1067 = vpop.f32.mrf.mxu0
  %v1068 = vadd.f32 0.0, %v1067
  %1069 = vdwg.mxu0
  %v1071 = vsel %vm538, %v1045, 0
  %1073 = vmatpush.msra.mxu0 0.0
  %1074 = vmatpush.msra.mxu0 0.0
  %1075 = vmatpush.msra.mxu0 0.0
  %1076 = vmatpush.msra.mxu0 0.0
  %1077 = vmatpush.msra.mxu0 0.0
  %1078 = vmatpush.msra.mxu0 0.0
  %1079 = vmatpush.msra.mxu0 0.0
  %1080 = vmatpush.msra.mxu0 0.0
  %1081 = vmatpush.msra.mxu0 0.0
  %1082 = vmatpush.msra.mxu0 0.0
  %1083 = vmatpush.msra.mxu0 0.0
  %1084 = vmatpush.msra.mxu0 0.0
  %1085 = vmatpush.msra.mxu0 0.0
  %1086 = vmatpush.msra.mxu0 0.0
  %1087 = vmatpush.msra.mxu0 0.0
  %1088 = vmatpush.msra.mxu0 %v1046
  %1089 = vmatmul.f32.gmra.mxu0 %v1071
  %v1090 = vpop.f32.mrf.mxu0
  %v1091 = vadd.f32 0.0, %v1090
  %1092 = vdwg.mxu0
  %v1093 = vperm.slane %v1068, 0
  %v1094 = vmul.f32 %v917, %v1093
  %v1095 = vmul.f32 %v919, %v1093
  %v1096 = vmul.f32 %v922, %v1093
  %v1097 = vmul.f32 %v924, %v1093
  %v1098 = vperm.slane %v1091, 0
  %v1099 = vadd.f32 %v1094, %v1098
  %v1100 = vadd.f32 %v1095, %v1098
  %v1101 = vadd.f32 %v1096, %v1098
  %v1102 = vadd.f32 %v1097, %v1098
  %v1103 = vmax.f32 %v1099, 0.0
  %v1104 = vmax.f32 %v1100, 0.0
  %v1105 = vmax.f32 %v1101, 0.0
  %v1106 = vmax.f32 %v1102, 0.0
  %v1107 = vpack.c.bf16 %v1104, %v1103
  %v1108 = vpack.c.bf16 %v1106, %v1105
  %v1109 = vld [vmem:[%s8] sm:$0xff]
  %v1110 = vld [vmem:[%s8 + $0x8] sm:$0xff]
  %v1111 = vld [vmem:[%s8 + $0x10] sm:$0xff]
  %v1112 = vld [vmem:[%s8 + $0x18] sm:$0xff]
  %v1113 = vld [vmem:[%s8 + $0x20] sm:$0xff]
  %v1114 = vld [vmem:[%s8 + $0x28] sm:$0xff]
  %v1115 = vld [vmem:[%s8 + $0x30] sm:$0xff]
  %v1116 = vld [vmem:[%s8 + $0x38] sm:$0xff]
  %v1117 = vld [vmem:[%s8 + $0x40] sm:$0xff]
  %v1118 = vld [vmem:[%s8 + $0x48] sm:$0xff]
  %v1119 = vld [vmem:[%s8 + $0x50] sm:$0xff]
  %v1120 = vld [vmem:[%s8 + $0x58] sm:$0xff]
  %v1121 = vld [vmem:[%s8 + $0x60] sm:$0xff]
  %v1122 = vld [vmem:[%s8 + $0x68] sm:$0xff]
  %v1123 = vld [vmem:[%s8 + $0x70] sm:$0xff]
  %v1124 = vld [vmem:[%s8 + $0x78] sm:$0xff]
  %v1125 = vld [vmem:[%s8 + $0x80] sm:$0xff]
  %v1126 = vld [vmem:[%s8 + $0x88] sm:$0xff]
  %v1127 = vld [vmem:[%s8 + $0x90] sm:$0xff]
  %v1128 = vld [vmem:[%s8 + $0x98] sm:$0xff]
  %v1129 = vld [vmem:[%s8 + $0xa0] sm:$0xff]
  %v1130 = vld [vmem:[%s8 + $0xa8] sm:$0xff]
  %v1131 = vld [vmem:[%s8 + $0xb0] sm:$0xff]
  %v1132 = vld [vmem:[%s8 + $0xb8] sm:$0xff]
  %v1133 = vld [vmem:[%s8 + $0xc0] sm:$0xff]
  %v1134 = vld [vmem:[%s8 + $0xc8] sm:$0xff]
  %v1135 = vld [vmem:[%s8 + $0xd0] sm:$0xff]
  %v1136 = vld [vmem:[%s8 + $0xd8] sm:$0xff]
  %v1137 = vld [vmem:[%s8 + $0xe0] sm:$0xff]
  %v1138 = vld [vmem:[%s8 + $0xe8] sm:$0xff]
  %v1139 = vld [vmem:[%s8 + $0xf0] sm:$0xff]
  %v1140 = vld [vmem:[%s8 + $0xf8] sm:$0xff]
  %v1173 = vunpack.c.l.b16 %v1109
  %v1174 = vunpack.c.h.b16 %v1109
  %v1175 = vunpack.c.l.b16 %v1110
  %v1176 = vunpack.c.h.b16 %v1110
  %v1177 = vunpack.c.l.b16 %v1111
  %v1178 = vunpack.c.h.b16 %v1111
  %v1179 = vunpack.c.l.b16 %v1112
  %v1180 = vunpack.c.h.b16 %v1112
  %v1181 = vunpack.c.l.b16 %v1113
  %v1182 = vunpack.c.h.b16 %v1113
  %v1183 = vunpack.c.l.b16 %v1114
  %v1184 = vunpack.c.h.b16 %v1114
  %v1185 = vunpack.c.l.b16 %v1115
  %v1186 = vunpack.c.h.b16 %v1115
  %v1187 = vunpack.c.l.b16 %v1116
  %v1188 = vunpack.c.h.b16 %v1116
  %v1189 = vunpack.c.l.b16 %v1117
  %v1190 = vunpack.c.h.b16 %v1117
  %v1191 = vunpack.c.l.b16 %v1118
  %v1192 = vunpack.c.h.b16 %v1118
  %v1193 = vunpack.c.l.b16 %v1119
  %v1194 = vunpack.c.h.b16 %v1119
  %v1195 = vunpack.c.l.b16 %v1120
  %v1196 = vunpack.c.h.b16 %v1120
  %v1197 = vunpack.c.l.b16 %v1121
  %v1198 = vunpack.c.h.b16 %v1121
  %v1199 = vunpack.c.l.b16 %v1122
  %v1200 = vunpack.c.h.b16 %v1122
  %v1201 = vunpack.c.l.b16 %v1123
  %v1202 = vunpack.c.h.b16 %v1123
  %v1203 = vunpack.c.l.b16 %v1124
  %v1204 = vunpack.c.h.b16 %v1124
  %v1205 = vunpack.c.l.b16 %v1125
  %v1206 = vunpack.c.h.b16 %v1125
  %v1207 = vunpack.c.l.b16 %v1126
  %v1208 = vunpack.c.h.b16 %v1126
  %v1209 = vunpack.c.l.b16 %v1127
  %v1210 = vunpack.c.h.b16 %v1127
  %v1211 = vunpack.c.l.b16 %v1128
  %v1212 = vunpack.c.h.b16 %v1128
  %v1213 = vunpack.c.l.b16 %v1129
  %v1214 = vunpack.c.h.b16 %v1129
  %v1215 = vunpack.c.l.b16 %v1130
  %v1216 = vunpack.c.h.b16 %v1130
  %v1217 = vunpack.c.l.b16 %v1131
  %v1218 = vunpack.c.h.b16 %v1131
  %v1219 = vunpack.c.l.b16 %v1132
  %v1220 = vunpack.c.h.b16 %v1132
  %v1221 = vunpack.c.l.b16 %v1133
  %v1222 = vunpack.c.h.b16 %v1133
  %v1223 = vunpack.c.l.b16 %v1134
  %v1224 = vunpack.c.h.b16 %v1134
  %v1225 = vunpack.c.l.b16 %v1135
  %v1226 = vunpack.c.h.b16 %v1135
  %v1227 = vunpack.c.l.b16 %v1136
  %v1228 = vunpack.c.h.b16 %v1136
  %v1229 = vunpack.c.l.b16 %v1137
  %v1230 = vunpack.c.h.b16 %v1137
  %v1231 = vunpack.c.l.b16 %v1138
  %v1232 = vunpack.c.h.b16 %v1138
  %v1233 = vunpack.c.l.b16 %v1139
  %v1234 = vunpack.c.h.b16 %v1139
  %v1235 = vunpack.c.l.b16 %v1140
  %v1236 = vunpack.c.h.b16 %v1140
  %v1237 = vpack.c.b16 %v1177, %v1173
  %v1238 = vpack.c.b16 %v1178, %v1174
  %v1239 = vpack.c.b16 %v1179, %v1175
  %v1240 = vpack.c.b16 %v1180, %v1176
  %v1241 = vpack.c.b16 %v1185, %v1181
  %v1242 = vpack.c.b16 %v1186, %v1182
  %v1243 = vpack.c.b16 %v1187, %v1183
  %v1244 = vpack.c.b16 %v1188, %v1184
  %v1245 = vpack.c.b16 %v1193, %v1189
  %v1246 = vpack.c.b16 %v1194, %v1190
  %v1247 = vpack.c.b16 %v1195, %v1191
  %v1248 = vpack.c.b16 %v1196, %v1192
  %v1249 = vpack.c.b16 %v1201, %v1197
  %v1250 = vpack.c.b16 %v1202, %v1198
  %v1251 = vpack.c.b16 %v1203, %v1199
  %v1252 = vpack.c.b16 %v1204, %v1200
  %v1253 = vpack.c.b16 %v1209, %v1205
  %v1254 = vpack.c.b16 %v1210, %v1206
  %v1255 = vpack.c.b16 %v1211, %v1207
  %v1256 = vpack.c.b16 %v1212, %v1208
  %v1257 = vpack.c.b16 %v1217, %v1213
  %v1258 = vpack.c.b16 %v1218, %v1214
  %v1259 = vpack.c.b16 %v1219, %v1215
  %v1260 = vpack.c.b16 %v1220, %v1216
  %v1261 = vpack.c.b16 %v1225, %v1221
  %v1262 = vpack.c.b16 %v1226, %v1222
  %v1263 = vpack.c.b16 %v1227, %v1223
  %v1264 = vpack.c.b16 %v1228, %v1224
  %v1265 = vpack.c.b16 %v1233, %v1229
  %v1266 = vpack.c.b16 %v1234, %v1230
  %v1267 = vpack.c.b16 %v1235, %v1231
  %v1268 = vpack.c.b16 %v1236, %v1232
  %1301 = vmatpush.bf16.msra.mxu0 %v1265
  %1302 = vmatpush.bf16.msra.mxu0 %v1261
  %1303 = vmatpush.bf16.msra.mxu0 %v1257
  %1304 = vmatpush.bf16.msra.mxu0 %v1253
  %1305 = vmatpush.bf16.msra.mxu0 %v1249
  %1306 = vmatpush.bf16.msra.mxu0 %v1245
  %1307 = vmatpush.bf16.msra.mxu0 %v1241
  %1308 = vmatpush.bf16.msra.mxu0 %v1237
  %1309 = vmatmul.bf16.gmra.mxu0 %v1107
  %v1310 = vpop.f32.mrf.mxu0
  %v1311 = vadd.f32 0.0, %v1310
  %v1312 = vpop.f32.mrf.mxu0
  %v1313 = vadd.f32 0.0, %v1312
  %1314 = vmatmul.bf16.gmra.mxu0 %v1108
  %v1315 = vpop.f32.mrf.mxu0
  %v1316 = vadd.f32 0.0, %v1315
  %v1317 = vpop.f32.mrf.mxu0
  %v1318 = vadd.f32 0.0, %v1317
  %1319 = vdwg.mxu0
  %1320 = vmatpush.bf16.msra.mxu0 %v1266
  %1321 = vmatpush.bf16.msra.mxu0 %v1262
  %1322 = vmatpush.bf16.msra.mxu0 %v1258
  %1323 = vmatpush.bf16.msra.mxu0 %v1254
  %1324 = vmatpush.bf16.msra.mxu0 %v1250
  %1325 = vmatpush.bf16.msra.mxu0 %v1246
  %1326 = vmatpush.bf16.msra.mxu0 %v1242
  %1327 = vmatpush.bf16.msra.mxu0 %v1238
  %1328 = vmatmul.bf16.gmra.mxu0 %v1107
  %v1329 = vpop.f32.mrf.mxu0
  %v1330 = vadd.f32 0.0, %v1329
  %v1331 = vpop.f32.mrf.mxu0
  %v1332 = vadd.f32 0.0, %v1331
  %1333 = vmatmul.bf16.gmra.mxu0 %v1108
  %v1334 = vpop.f32.mrf.mxu0
  %v1335 = vadd.f32 0.0, %v1334
  %v1336 = vpop.f32.mrf.mxu0
  %v1337 = vadd.f32 0.0, %v1336
  %1338 = vdwg.mxu0
  %1339 = vmatpush.bf16.msra.mxu0 %v1267
  %1340 = vmatpush.bf16.msra.mxu0 %v1263
  %1341 = vmatpush.bf16.msra.mxu0 %v1259
  %1342 = vmatpush.bf16.msra.mxu0 %v1255
  %1343 = vmatpush.bf16.msra.mxu0 %v1251
  %1344 = vmatpush.bf16.msra.mxu0 %v1247
  %1345 = vmatpush.bf16.msra.mxu0 %v1243
  %1346 = vmatpush.bf16.msra.mxu0 %v1239
  %1347 = vmatmul.bf16.gmra.mxu0 %v1107
  %v1348 = vpop.f32.mrf.mxu0
  %v1349 = vadd.f32 0.0, %v1348
  %v1350 = vpop.f32.mrf.mxu0
  %v1351 = vadd.f32 0.0, %v1350
  %1352 = vmatmul.bf16.gmra.mxu0 %v1108
  %v1353 = vpop.f32.mrf.mxu0
  %v1354 = vadd.f32 0.0, %v1353
  %v1355 = vpop.f32.mrf.mxu0
  %v1356 = vadd.f32 0.0, %v1355
  %1357 = vdwg.mxu0
  %1358 = vmatpush.bf16.msra.mxu0 %v1268
  %1359 = vmatpush.bf16.msra.mxu0 %v1264
  %1360 = vmatpush.bf16.msra.mxu0 %v1260
  %1361 = vmatpush.bf16.msra.mxu0 %v1256
  %1362 = vmatpush.bf16.msra.mxu0 %v1252
  %1363 = vmatpush.bf16.msra.mxu0 %v1248
  %1364 = vmatpush.bf16.msra.mxu0 %v1244
  %1365 = vmatpush.bf16.msra.mxu0 %v1240
  %1366 = vmatmul.bf16.gmra.mxu0 %v1107
  %v1367 = vpop.f32.mrf.mxu0
  %v1368 = vadd.f32 0.0, %v1367
  %v1369 = vpop.f32.mrf.mxu0
  %v1370 = vadd.f32 0.0, %v1369
  %1371 = vmatmul.bf16.gmra.mxu0 %v1108
  %v1372 = vpop.f32.mrf.mxu0
  %v1373 = vadd.f32 0.0, %v1372
  %v1374 = vpop.f32.mrf.mxu0
  %v1375 = vadd.f32 0.0, %v1374
  %1376 = vdwg.mxu0
  %v1377 = vld [vmem:[%s13] sm:$0xff]
  %v1378 = vld [vmem:[%s13 + $0x8] sm:$0xff]
  %v1379 = vld [vmem:[%s13 + $0x10] sm:$0xff]
  %v1380 = vld [vmem:[%s13 + $0x18] sm:$0xff]
  %v1381 = vld [vmem:[%s13 + $0x20] sm:$0xff]
  %v1382 = vld [vmem:[%s13 + $0x28] sm:$0xff]
  %v1383 = vld [vmem:[%s13 + $0x30] sm:$0xff]
  %v1384 = vld [vmem:[%s13 + $0x38] sm:$0xff]
  %v1385 = vld [vmem:[%s13 + $0x40] sm:$0xff]
  %v1386 = vld [vmem:[%s13 + $0x48] sm:$0xff]
  %v1387 = vld [vmem:[%s13 + $0x50] sm:$0xff]
  %v1388 = vld [vmem:[%s13 + $0x58] sm:$0xff]
  %v1389 = vld [vmem:[%s13 + $0x60] sm:$0xff]
  %v1390 = vld [vmem:[%s13 + $0x68] sm:$0xff]
  %v1391 = vld [vmem:[%s13 + $0x70] sm:$0xff]
  %v1392 = vld [vmem:[%s13 + $0x78] sm:$0xff]
  %v1393 = vld [vmem:[%s13 + $0x80] sm:$0xff]
  %v1394 = vld [vmem:[%s13 + $0x88] sm:$0xff]
  %v1395 = vld [vmem:[%s13 + $0x90] sm:$0xff]
  %v1396 = vld [vmem:[%s13 + $0x98] sm:$0xff]
  %v1397 = vld [vmem:[%s13 + $0xa0] sm:$0xff]
  %v1398 = vld [vmem:[%s13 + $0xa8] sm:$0xff]
  %v1399 = vld [vmem:[%s13 + $0xb0] sm:$0xff]
  %v1400 = vld [vmem:[%s13 + $0xb8] sm:$0xff]
  %v1401 = vld [vmem:[%s13 + $0xc0] sm:$0xff]
  %v1402 = vld [vmem:[%s13 + $0xc8] sm:$0xff]
  %v1403 = vld [vmem:[%s13 + $0xd0] sm:$0xff]
  %v1404 = vld [vmem:[%s13 + $0xd8] sm:$0xff]
  %v1405 = vld [vmem:[%s13 + $0xe0] sm:$0xff]
  %v1406 = vld [vmem:[%s13 + $0xe8] sm:$0xff]
  %v1407 = vld [vmem:[%s13 + $0xf0] sm:$0xff]
  %v1408 = vld [vmem:[%s13 + $0xf8] sm:$0xff]
  %v1409 = vld [vmem:[%s13 + $0x100] sm:$0xff]
  %v1410 = vld [vmem:[%s13 + $0x108] sm:$0xff]
  %v1411 = vld [vmem:[%s13 + $0x110] sm:$0xff]
  %v1412 = vld [vmem:[%s13 + $0x118] sm:$0xff]
  %v1413 = vld [vmem:[%s13 + $0x120] sm:$0xff]
  %v1414 = vld [vmem:[%s13 + $0x128] sm:$0xff]
  %v1415 = vld [vmem:[%s13 + $0x130] sm:$0xff]
  %v1416 = vld [vmem:[%s13 + $0x138] sm:$0xff]
  %v1417 = vld [vmem:[%s13 + $0x140] sm:$0xff]
  %v1418 = vld [vmem:[%s13 + $0x148] sm:$0xff]
  %v1419 = vld [vmem:[%s13 + $0x150] sm:$0xff]
  %v1420 = vld [vmem:[%s13 + $0x158] sm:$0xff]
  %v1421 = vld [vmem:[%s13 + $0x160] sm:$0xff]
  %v1422 = vld [vmem:[%s13 + $0x168] sm:$0xff]
  %v1423 = vld [vmem:[%s13 + $0x170] sm:$0xff]
  %v1424 = vld [vmem:[%s13 + $0x178] sm:$0xff]
  %v1425 = vld [vmem:[%s13 + $0x180] sm:$0xff]
  %v1426 = vld [vmem:[%s13 + $0x188] sm:$0xff]
  %v1427 = vld [vmem:[%s13 + $0x190] sm:$0xff]
  %v1428 = vld [vmem:[%s13 + $0x198] sm:$0xff]
  %v1429 = vld [vmem:[%s13 + $0x1a0] sm:$0xff]
  %v1430 = vld [vmem:[%s13 + $0x1a8] sm:$0xff]
  %v1431 = vld [vmem:[%s13 + $0x1b0] sm:$0xff]
  %v1432 = vld [vmem:[%s13 + $0x1b8] sm:$0xff]
  %v1433 = vld [vmem:[%s13 + $0x1c0] sm:$0xff]
  %v1434 = vld [vmem:[%s13 + $0x1c8] sm:$0xff]
  %v1435 = vld [vmem:[%s13 + $0x1d0] sm:$0xff]
  %v1436 = vld [vmem:[%s13 + $0x1d8] sm:$0xff]
  %v1437 = vld [vmem:[%s13 + $0x1e0] sm:$0xff]
  %v1438 = vld [vmem:[%s13 + $0x1e8] sm:$0xff]
  %v1439 = vld [vmem:[%s13 + $0x1f0] sm:$0xff]
  %v1440 = vld [vmem:[%s13 + $0x1f8] sm:$0xff]
  %1441 = vmatpush.msra.mxu0 0.0
  %1442 = vmatpush.msra.mxu0 0.0
  %1443 = vmatpush.msra.mxu0 0.0
  %1444 = vmatpush.msra.mxu0 0.0
  %1445 = vmatpush.msra.mxu0 0.0
  %1446 = vmatpush.msra.mxu0 0.0
  %1447 = vmatpush.msra.mxu0 0.0
  %1448 = vmatpush.msra.mxu0 0.0
  %1449 = vmatpush.msra.mxu0 0.0
  %1450 = vmatpush.msra.mxu0 0.0
  %1451 = vmatpush.msra.mxu0 0.0
  %1452 = vmatpush.msra.mxu0 0.0
  %1453 = vmatpush.msra.mxu0 %v1318
  %1454 = vmatpush.msra.mxu0 %v1316
  %1455 = vmatpush.msra.mxu0 %v1313
  %1456 = vmatpush.msra.mxu0 %v1311
  %1457 = vmatmul.f32.gmra.mxu0 %v424
  %v1458 = vpop.f32.mrf.mxu0
  %v1459 = vadd.f32 0.0, %v1458
  %1460 = vdwg.mxu0
  %1461 = vmatpush.msra.mxu0 0.0
  %1462 = vmatpush.msra.mxu0 0.0
  %1463 = vmatpush.msra.mxu0 0.0
  %1464 = vmatpush.msra.mxu0 0.0
  %1465 = vmatpush.msra.mxu0 0.0
  %1466 = vmatpush.msra.mxu0 0.0
  %1467 = vmatpush.msra.mxu0 0.0
  %1468 = vmatpush.msra.mxu0 0.0
  %1469 = vmatpush.msra.mxu0 0.0
  %1470 = vmatpush.msra.mxu0 0.0
  %1471 = vmatpush.msra.mxu0 0.0
  %1472 = vmatpush.msra.mxu0 0.0
  %1473 = vmatpush.msra.mxu0 %v1337
  %1474 = vmatpush.msra.mxu0 %v1335
  %1475 = vmatpush.msra.mxu0 %v1332
  %1476 = vmatpush.msra.mxu0 %v1330
  %1477 = vmatmul.f32.gmra.mxu0 %v424
  %v1478 = vpop.f32.mrf.mxu0
  %v1479 = vadd.f32 0.0, %v1478
  %1480 = vdwg.mxu0
  %1481 = vmatpush.msra.mxu0 0.0
  %1482 = vmatpush.msra.mxu0 0.0
  %1483 = vmatpush.msra.mxu0 0.0
  %1484 = vmatpush.msra.mxu0 0.0
  %1485 = vmatpush.msra.mxu0 0.0
  %1486 = vmatpush.msra.mxu0 0.0
  %1487 = vmatpush.msra.mxu0 0.0
  %1488 = vmatpush.msra.mxu0 0.0
  %1489 = vmatpush.msra.mxu0 0.0
  %1490 = vmatpush.msra.mxu0 0.0
  %1491 = vmatpush.msra.mxu0 0.0
  %1492 = vmatpush.msra.mxu0 0.0
  %1493 = vmatpush.msra.mxu0 %v1356
  %1494 = vmatpush.msra.mxu0 %v1354
  %1495 = vmatpush.msra.mxu0 %v1351
  %1496 = vmatpush.msra.mxu0 %v1349
  %1497 = vmatmul.f32.gmra.mxu0 %v424
  %v1498 = vpop.f32.mrf.mxu0
  %v1499 = vadd.f32 0.0, %v1498
  %1500 = vdwg.mxu0
  %1501 = vmatpush.msra.mxu0 0.0
  %1502 = vmatpush.msra.mxu0 0.0
  %1503 = vmatpush.msra.mxu0 0.0
  %1504 = vmatpush.msra.mxu0 0.0
  %1505 = vmatpush.msra.mxu0 0.0
  %1506 = vmatpush.msra.mxu0 0.0
  %1507 = vmatpush.msra.mxu0 0.0
  %1508 = vmatpush.msra.mxu0 0.0
  %1509 = vmatpush.msra.mxu0 0.0
  %1510 = vmatpush.msra.mxu0 0.0
  %1511 = vmatpush.msra.mxu0 0.0
  %1512 = vmatpush.msra.mxu0 0.0
  %1513 = vmatpush.msra.mxu0 %v1375
  %1514 = vmatpush.msra.mxu0 %v1373
  %1515 = vmatpush.msra.mxu0 %v1370
  %1516 = vmatpush.msra.mxu0 %v1368
  %1517 = vmatmul.f32.gmra.mxu0 %v424
  %v1518 = vpop.f32.mrf.mxu0
  %v1519 = vadd.f32 0.0, %v1518
  %1520 = vdwg.mxu0
  %v1521 = vmul.f32 %v1311, %v1311
  %v1522 = vmul.f32 %v1330, %v1330
  %v1523 = vmul.f32 %v1349, %v1349
  %v1524 = vmul.f32 %v1368, %v1368
  %v1525 = vmul.f32 %v1313, %v1313
  %v1526 = vmul.f32 %v1332, %v1332
  %v1527 = vmul.f32 %v1351, %v1351
  %v1528 = vmul.f32 %v1370, %v1370
  %v1529 = vmul.f32 %v1316, %v1316
  %v1530 = vmul.f32 %v1335, %v1335
  %v1531 = vmul.f32 %v1354, %v1354
  %v1532 = vmul.f32 %v1373, %v1373
  %v1533 = vmul.f32 %v1318, %v1318
  %v1534 = vmul.f32 %v1337, %v1337
  %v1535 = vmul.f32 %v1356, %v1356
  %v1536 = vmul.f32 %v1375, %v1375
  %1537 = vmatpush.msra.mxu0 0.0
  %1538 = vmatpush.msra.mxu0 0.0
  %1539 = vmatpush.msra.mxu0 0.0
  %1540 = vmatpush.msra.mxu0 0.0
  %1541 = vmatpush.msra.mxu0 0.0
  %1542 = vmatpush.msra.mxu0 0.0
  %1543 = vmatpush.msra.mxu0 0.0
  %1544 = vmatpush.msra.mxu0 0.0
  %1545 = vmatpush.msra.mxu0 0.0
  %1546 = vmatpush.msra.mxu0 0.0
  %1547 = vmatpush.msra.mxu0 0.0
  %1548 = vmatpush.msra.mxu0 0.0
  %1549 = vmatpush.msra.mxu0 %v1533
  %1550 = vmatpush.msra.mxu0 %v1529
  %1551 = vmatpush.msra.mxu0 %v1525
  %1552 = vmatpush.msra.mxu0 %v1521
  %1553 = vmatmul.f32.gmra.mxu0 %v424
  %v1554 = vpop.f32.mrf.mxu0
  %v1555 = vadd.f32 0.0, %v1554
  %1556 = vdwg.mxu0
  %1557 = vmatpush.msra.mxu0 0.0
  %1558 = vmatpush.msra.mxu0 0.0
  %1559 = vmatpush.msra.mxu0 0.0
  %1560 = vmatpush.msra.mxu0 0.0
  %1561 = vmatpush.msra.mxu0 0.0
  %1562 = vmatpush.msra.mxu0 0.0
  %1563 = vmatpush.msra.mxu0 0.0
  %1564 = vmatpush.msra.mxu0 0.0
  %1565 = vmatpush.msra.mxu0 0.0
  %1566 = vmatpush.msra.mxu0 0.0
  %1567 = vmatpush.msra.mxu0 0.0
  %1568 = vmatpush.msra.mxu0 0.0
  %1569 = vmatpush.msra.mxu0 %v1534
  %1570 = vmatpush.msra.mxu0 %v1530
  %1571 = vmatpush.msra.mxu0 %v1526
  %1572 = vmatpush.msra.mxu0 %v1522
  %1573 = vmatmul.f32.gmra.mxu0 %v424
  %v1574 = vpop.f32.mrf.mxu0
  %v1575 = vadd.f32 0.0, %v1574
  %1576 = vdwg.mxu0
  %1577 = vmatpush.msra.mxu0 0.0
  %1578 = vmatpush.msra.mxu0 0.0
  %1579 = vmatpush.msra.mxu0 0.0
  %1580 = vmatpush.msra.mxu0 0.0
  %1581 = vmatpush.msra.mxu0 0.0
  %1582 = vmatpush.msra.mxu0 0.0
  %1583 = vmatpush.msra.mxu0 0.0
  %1584 = vmatpush.msra.mxu0 0.0
  %1585 = vmatpush.msra.mxu0 0.0
  %1586 = vmatpush.msra.mxu0 0.0
  %1587 = vmatpush.msra.mxu0 0.0
  %1588 = vmatpush.msra.mxu0 0.0
  %1589 = vmatpush.msra.mxu0 %v1535
  %1590 = vmatpush.msra.mxu0 %v1531
  %1591 = vmatpush.msra.mxu0 %v1527
  %1592 = vmatpush.msra.mxu0 %v1523
  %1593 = vmatmul.f32.gmra.mxu0 %v424
  %v1594 = vpop.f32.mrf.mxu0
  %v1595 = vadd.f32 0.0, %v1594
  %1596 = vdwg.mxu0
  %1597 = vmatpush.msra.mxu0 0.0
  %1598 = vmatpush.msra.mxu0 0.0
  %1599 = vmatpush.msra.mxu0 0.0
  %1600 = vmatpush.msra.mxu0 0.0
  %1601 = vmatpush.msra.mxu0 0.0
  %1602 = vmatpush.msra.mxu0 0.0
  %1603 = vmatpush.msra.mxu0 0.0
  %1604 = vmatpush.msra.mxu0 0.0
  %1605 = vmatpush.msra.mxu0 0.0
  %1606 = vmatpush.msra.mxu0 0.0
  %1607 = vmatpush.msra.mxu0 0.0
  %1608 = vmatpush.msra.mxu0 0.0
  %1609 = vmatpush.msra.mxu0 %v1536
  %1610 = vmatpush.msra.mxu0 %v1532
  %1611 = vmatpush.msra.mxu0 %v1528
  %1612 = vmatpush.msra.mxu0 %v1524
  %1613 = vmatmul.f32.gmra.mxu0 %v424
  %v1614 = vpop.f32.mrf.mxu0
  %v1615 = vadd.f32 0.0, %v1614
  %1616 = vdwg.mxu0
  %1617 = vmatpush.msra.mxu0 %v1392
  %1618 = vmatpush.msra.mxu0 %v1391
  %1619 = vmatpush.msra.mxu0 %v1390
  %1620 = vmatpush.msra.mxu0 %v1389
  %1621 = vmatpush.msra.mxu0 %v1388
  %1622 = vmatpush.msra.mxu0 %v1387
  %1623 = vmatpush.msra.mxu0 %v1386
  %1624 = vmatpush.msra.mxu0 %v1385
  %1625 = vmatpush.msra.mxu0 %v1384
  %1626 = vmatpush.msra.mxu0 %v1383
  %1627 = vmatpush.msra.mxu0 %v1382
  %1628 = vmatpush.msra.mxu0 %v1381
  %1629 = vmatpush.msra.mxu0 %v1380
  %1630 = vmatpush.msra.mxu0 %v1379
  %1631 = vmatpush.msra.mxu0 %v1378
  %1632 = vmatpush.msra.mxu0 %v1377
  %1633 = vmatmul.f32.gmra.mxu0 %v1459
  %v1634 = vpop.f32.mrf.mxu0
  %v1635 = vadd.f32 0.0, %v1634
  %1636 = vdwg.mxu0
  %1637 = vmatpush.msra.mxu0 %v1408
  %1638 = vmatpush.msra.mxu0 %v1407
  %1639 = vmatpush.msra.mxu0 %v1406
  %1640 = vmatpush.msra.mxu0 %v1405
  %1641 = vmatpush.msra.mxu0 %v1404
  %1642 = vmatpush.msra.mxu0 %v1403
  %1643 = vmatpush.msra.mxu0 %v1402
  %1644 = vmatpush.msra.mxu0 %v1401
  %1645 = vmatpush.msra.mxu0 %v1400
  %1646 = vmatpush.msra.mxu0 %v1399
  %1647 = vmatpush.msra.mxu0 %v1398
  %1648 = vmatpush.msra.mxu0 %v1397
  %1649 = vmatpush.msra.mxu0 %v1396
  %1650 = vmatpush.msra.mxu0 %v1395
  %1651 = vmatpush.msra.mxu0 %v1394
  %1652 = vmatpush.msra.mxu0 %v1393
  %1653 = vmatmul.f32.gmra.mxu0 %v1479
  %v1654 = vpop.f32.mrf.mxu0
  %v1655 = vadd.f32 %v1635, %v1654
  %1656 = vdwg.mxu0
  %1657 = vmatpush.msra.mxu0 %v1424
  %1658 = vmatpush.msra.mxu0 %v1423
  %1659 = vmatpush.msra.mxu0 %v1422
  %1660 = vmatpush.msra.mxu0 %v1421
  %1661 = vmatpush.msra.mxu0 %v1420
  %1662 = vmatpush.msra.mxu0 %v1419
  %1663 = vmatpush.msra.mxu0 %v1418
  %1664 = vmatpush.msra.mxu0 %v1417
  %1665 = vmatpush.msra.mxu0 %v1416
  %1666 = vmatpush.msra.mxu0 %v1415
  %1667 = vmatpush.msra.mxu0 %v1414
  %1668 = vmatpush.msra.mxu0 %v1413
  %1669 = vmatpush.msra.mxu0 %v1412
  %1670 = vmatpush.msra.mxu0 %v1411
  %1671 = vmatpush.msra.mxu0 %v1410
  %1672 = vmatpush.msra.mxu0 %v1409
  %1673 = vmatmul.f32.gmra.mxu0 %v1499
  %v1674 = vpop.f32.mrf.mxu0
  %v1675 = vadd.f32 %v1655, %v1674
  %1676 = vdwg.mxu0
  %1677 = vmatpush.msra.mxu0 %v1440
  %1678 = vmatpush.msra.mxu0 %v1439
  %1679 = vmatpush.msra.mxu0 %v1438
  %1680 = vmatpush.msra.mxu0 %v1437
  %1681 = vmatpush.msra.mxu0 %v1436
  %1682 = vmatpush.msra.mxu0 %v1435
  %1683 = vmatpush.msra.mxu0 %v1434
  %1684 = vmatpush.msra.mxu0 %v1433
  %1685 = vmatpush.msra.mxu0 %v1432
  %1686 = vmatpush.msra.mxu0 %v1431
  %1687 = vmatpush.msra.mxu0 %v1430
  %1688 = vmatpush.msra.mxu0 %v1429
  %1689 = vmatpush.msra.mxu0 %v1428
  %1690 = vmatpush.msra.mxu0 %v1427
  %1691 = vmatpush.msra.mxu0 %v1426
  %1692 = vmatpush.msra.mxu0 %v1425
  %1693 = vmatmul.f32.gmra.mxu0 %v1519
  %v1694 = vpop.f32.mrf.mxu0
  %v1695 = vadd.f32 %v1675, %v1694
  %1696 = vdwg.mxu0
  %1697 = vmatpush.msra.mxu0 %v1392
  %1698 = vmatpush.msra.mxu0 %v1391
  %1699 = vmatpush.msra.mxu0 %v1390
  %1700 = vmatpush.msra.mxu0 %v1389
  %1701 = vmatpush.msra.mxu0 %v1388
  %1702 = vmatpush.msra.mxu0 %v1387
  %1703 = vmatpush.msra.mxu0 %v1386
  %1704 = vmatpush.msra.mxu0 %v1385
  %1705 = vmatpush.msra.mxu0 %v1384
  %1706 = vmatpush.msra.mxu0 %v1383
  %1707 = vmatpush.msra.mxu0 %v1382
  %1708 = vmatpush.msra.mxu0 %v1381
  %1709 = vmatpush.msra.mxu0 %v1380
  %1710 = vmatpush.msra.mxu0 %v1379
  %1711 = vmatpush.msra.mxu0 %v1378
  %1712 = vmatpush.msra.mxu0 %v1377
  %1713 = vmatmul.f32.gmra.mxu0 %v1555
  %v1714 = vpop.f32.mrf.mxu0
  %v1715 = vadd.f32 0.0, %v1714
  %1716 = vdwg.mxu0
  %1717 = vmatpush.msra.mxu0 %v1408
  %1718 = vmatpush.msra.mxu0 %v1407
  %1719 = vmatpush.msra.mxu0 %v1406
  %1720 = vmatpush.msra.mxu0 %v1405
  %1721 = vmatpush.msra.mxu0 %v1404
  %1722 = vmatpush.msra.mxu0 %v1403
  %1723 = vmatpush.msra.mxu0 %v1402
  %1724 = vmatpush.msra.mxu0 %v1401
  %1725 = vmatpush.msra.mxu0 %v1400
  %1726 = vmatpush.msra.mxu0 %v1399
  %1727 = vmatpush.msra.mxu0 %v1398
  %1728 = vmatpush.msra.mxu0 %v1397
  %1729 = vmatpush.msra.mxu0 %v1396
  %1730 = vmatpush.msra.mxu0 %v1395
  %1731 = vmatpush.msra.mxu0 %v1394
  %1732 = vmatpush.msra.mxu0 %v1393
  %1733 = vmatmul.f32.gmra.mxu0 %v1575
  %v1734 = vpop.f32.mrf.mxu0
  %v1735 = vadd.f32 %v1715, %v1734
  %1736 = vdwg.mxu0
  %1737 = vmatpush.msra.mxu0 %v1424
  %1738 = vmatpush.msra.mxu0 %v1423
  %1739 = vmatpush.msra.mxu0 %v1422
  %1740 = vmatpush.msra.mxu0 %v1421
  %1741 = vmatpush.msra.mxu0 %v1420
  %1742 = vmatpush.msra.mxu0 %v1419
  %1743 = vmatpush.msra.mxu0 %v1418
  %1744 = vmatpush.msra.mxu0 %v1417
  %1745 = vmatpush.msra.mxu0 %v1416
  %1746 = vmatpush.msra.mxu0 %v1415
  %1747 = vmatpush.msra.mxu0 %v1414
  %1748 = vmatpush.msra.mxu0 %v1413
  %1749 = vmatpush.msra.mxu0 %v1412
  %1750 = vmatpush.msra.mxu0 %v1411
  %1751 = vmatpush.msra.mxu0 %v1410
  %1752 = vmatpush.msra.mxu0 %v1409
  %1753 = vmatmul.f32.gmra.mxu0 %v1595
  %v1754 = vpop.f32.mrf.mxu0
  %v1755 = vadd.f32 %v1735, %v1754
  %1756 = vdwg.mxu0
  %1757 = vmatpush.msra.mxu0 %v1440
  %1758 = vmatpush.msra.mxu0 %v1439
  %1759 = vmatpush.msra.mxu0 %v1438
  %1760 = vmatpush.msra.mxu0 %v1437
  %1761 = vmatpush.msra.mxu0 %v1436
  %1762 = vmatpush.msra.mxu0 %v1435
  %1763 = vmatpush.msra.mxu0 %v1434
  %1764 = vmatpush.msra.mxu0 %v1433
  %1765 = vmatpush.msra.mxu0 %v1432
  %1766 = vmatpush.msra.mxu0 %v1431
  %1767 = vmatpush.msra.mxu0 %v1430
  %1768 = vmatpush.msra.mxu0 %v1429
  %1769 = vmatpush.msra.mxu0 %v1428
  %1770 = vmatpush.msra.mxu0 %v1427
  %1771 = vmatpush.msra.mxu0 %v1426
  %1772 = vmatpush.msra.mxu0 %v1425
  %1773 = vmatmul.f32.gmra.mxu0 %v1615
  %v1774 = vpop.f32.mrf.mxu0
  %v1775 = vadd.f32 %v1755, %v1774
  %1776 = vdwg.mxu0
  %v1777 = vmul.f32 %v1695, %v516
  %v1778 = vmul.f32 %v1775, %v516
  %v1779 = vmul.f32 %v1777, %v1777
  %v1780 = vsub.f32 %v1778, %v1779
  %v1781 = vld [vmem:[%s9] sm:$0x1]
  %v1782 = vadd.f32 %v1780, 1e-05
  %v1783 = vrsqrt.pop %v1782
  %v1784 = vmul.f32 %v1783, %v1782
  %v1785 = vmul.f32 %v1784, %v1783
  %v1786 = vmul.f32 0.5, %v1785
  %v1787 = vsub.f32 1.5, %v1786
  %v1788 = vmul.f32 %v1783, %v1787
  %vm1789 = vweird.f32 %v1782
  %vm1790 = vweird.f32 %v1783
  %vm1791 = vmor %vm1789, %vm1790
  %v1792 = vsel %vm1791, %v1783, %v1788
  %v1793 = vmul.f32 %v1781, %v1792
  %v1794 = vld [vmem:[%s10] sm:$0x1]
  %v1795 = vmul.f32 %v1777, %v1793
  %v1796 = vsub.f32 %v1794, %v1795
  %v1797 = vld [vmem:[%s14] sm:$0xff]
  %v1798 = vld [vmem:[%s14 + $0x8] sm:$0xff]
  %v1799 = vld [vmem:[%s14 + $0x10] sm:$0xff]
  %v1800 = vld [vmem:[%s14 + $0x18] sm:$0xff]
  %v1801 = vld [vmem:[%s14 + $0x20] sm:$0xff]
  %v1802 = vld [vmem:[%s14 + $0x28] sm:$0xff]
  %v1803 = vld [vmem:[%s14 + $0x30] sm:$0xff]
  %v1804 = vld [vmem:[%s14 + $0x38] sm:$0xff]
  %v1805 = vld [vmem:[%s14 + $0x40] sm:$0xff]
  %v1806 = vld [vmem:[%s14 + $0x48] sm:$0xff]
  %v1807 = vld [vmem:[%s14 + $0x50] sm:$0xff]
  %v1808 = vld [vmem:[%s14 + $0x58] sm:$0xff]
  %v1809 = vld [vmem:[%s14 + $0x60] sm:$0xff]
  %v1810 = vld [vmem:[%s14 + $0x68] sm:$0xff]
  %v1811 = vld [vmem:[%s14 + $0x70] sm:$0xff]
  %v1812 = vld [vmem:[%s14 + $0x78] sm:$0xff]
  %v1814 = vsel %vm422, %v1793, 0
  %1816 = vmatpush.msra.mxu0 0.0
  %1817 = vmatpush.msra.mxu0 0.0
  %1818 = vmatpush.msra.mxu0 0.0
  %1819 = vmatpush.msra.mxu0 0.0
  %1820 = vmatpush.msra.mxu0 0.0
  %1821 = vmatpush.msra.mxu0 0.0
  %1822 = vmatpush.msra.mxu0 0.0
  %1823 = vmatpush.msra.mxu0 0.0
  %1824 = vmatpush.msra.mxu0 0.0
  %1825 = vmatpush.msra.mxu0 0.0
  %1826 = vmatpush.msra.mxu0 0.0
  %1827 = vmatpush.msra.mxu0 0.0
  %1828 = vmatpush.msra.mxu0 %v1809
  %1829 = vmatpush.msra.mxu0 %v1805
  %1830 = vmatpush.msra.mxu0 %v1801
  %1831 = vmatpush.msra.mxu0 %v1797
  %1832 = vmatmul.f32.gmra.mxu0 %v1814
  %v1833 = vpop.f32.mrf.mxu0
  %v1834 = vadd.f32 0.0, %v1833
  %1835 = vdwg.mxu0
  %1836 = vmatpush.msra.mxu0 0.0
  %1837 = vmatpush.msra.mxu0 0.0
  %1838 = vmatpush.msra.mxu0 0.0
  %1839 = vmatpush.msra.mxu0 0.0
  %1840 = vmatpush.msra.mxu0 0.0
  %1841 = vmatpush.msra.mxu0 0.0
  %1842 = vmatpush.msra.mxu0 0.0
  %1843 = vmatpush.msra.mxu0 0.0
  %1844 = vmatpush.msra.mxu0 0.0
  %1845 = vmatpush.msra.mxu0 0.0
  %1846 = vmatpush.msra.mxu0 0.0
  %1847 = vmatpush.msra.mxu0 0.0
  %1848 = vmatpush.msra.mxu0 %v1810
  %1849 = vmatpush.msra.mxu0 %v1806
  %1850 = vmatpush.msra.mxu0 %v1802
  %1851 = vmatpush.msra.mxu0 %v1798
  %1852 = vmatmul.f32.gmra.mxu0 %v1814
  %v1853 = vpop.f32.mrf.mxu0
  %v1854 = vadd.f32 0.0, %v1853
  %1855 = vdwg.mxu0
  %1856 = vmatpush.msra.mxu0 0.0
  %1857 = vmatpush.msra.mxu0 0.0
  %1858 = vmatpush.msra.mxu0 0.0
  %1859 = vmatpush.msra.mxu0 0.0
  %1860 = vmatpush.msra.mxu0 0.0
  %1861 = vmatpush.msra.mxu0 0.0
  %1862 = vmatpush.msra.mxu0 0.0
  %1863 = vmatpush.msra.mxu0 0.0
  %1864 = vmatpush.msra.mxu0 0.0
  %1865 = vmatpush.msra.mxu0 0.0
  %1866 = vmatpush.msra.mxu0 0.0
  %1867 = vmatpush.msra.mxu0 0.0
  %1868 = vmatpush.msra.mxu0 %v1811
  %1869 = vmatpush.msra.mxu0 %v1807
  %1870 = vmatpush.msra.mxu0 %v1803
  %1871 = vmatpush.msra.mxu0 %v1799
  %1872 = vmatmul.f32.gmra.mxu0 %v1814
  %v1873 = vpop.f32.mrf.mxu0
  %v1874 = vadd.f32 0.0, %v1873
  %1875 = vdwg.mxu0
  %1876 = vmatpush.msra.mxu0 0.0
  %1877 = vmatpush.msra.mxu0 0.0
  %1878 = vmatpush.msra.mxu0 0.0
  %1879 = vmatpush.msra.mxu0 0.0
  %1880 = vmatpush.msra.mxu0 0.0
  %1881 = vmatpush.msra.mxu0 0.0
  %1882 = vmatpush.msra.mxu0 0.0
  %1883 = vmatpush.msra.mxu0 0.0
  %1884 = vmatpush.msra.mxu0 0.0
  %1885 = vmatpush.msra.mxu0 0.0
  %1886 = vmatpush.msra.mxu0 0.0
  %1887 = vmatpush.msra.mxu0 0.0
  %1888 = vmatpush.msra.mxu0 %v1812
  %1889 = vmatpush.msra.mxu0 %v1808
  %1890 = vmatpush.msra.mxu0 %v1804
  %1891 = vmatpush.msra.mxu0 %v1800
  %1892 = vmatmul.f32.gmra.mxu0 %v1814
  %v1893 = vpop.f32.mrf.mxu0
  %v1894 = vadd.f32 0.0, %v1893
  %1895 = vdwg.mxu0
  %v1897 = vsel %vm422, %v1796, 0
  %1899 = vmatpush.msra.mxu0 0.0
  %1900 = vmatpush.msra.mxu0 0.0
  %1901 = vmatpush.msra.mxu0 0.0
  %1902 = vmatpush.msra.mxu0 0.0
  %1903 = vmatpush.msra.mxu0 0.0
  %1904 = vmatpush.msra.mxu0 0.0
  %1905 = vmatpush.msra.mxu0 0.0
  %1906 = vmatpush.msra.mxu0 0.0
  %1907 = vmatpush.msra.mxu0 0.0
  %1908 = vmatpush.msra.mxu0 0.0
  %1909 = vmatpush.msra.mxu0 0.0
  %1910 = vmatpush.msra.mxu0 0.0
  %1911 = vmatpush.msra.mxu0 %v1809
  %1912 = vmatpush.msra.mxu0 %v1805
  %1913 = vmatpush.msra.mxu0 %v1801
  %1914 = vmatpush.msra.mxu0 %v1797
  %1915 = vmatmul.f32.gmra.mxu0 %v1897
  %v1916 = vpop.f32.mrf.mxu0
  %v1917 = vadd.f32 0.0, %v1916
  %1918 = vdwg.mxu0
  %1919 = vmatpush.msra.mxu0 0.0
  %1920 = vmatpush.msra.mxu0 0.0
  %1921 = vmatpush.msra.mxu0 0.0
  %1922 = vmatpush.msra.mxu0 0.0
  %1923 = vmatpush.msra.mxu0 0.0
  %1924 = vmatpush.msra.mxu0 0.0
  %1925 = vmatpush.msra.mxu0 0.0
  %1926 = vmatpush.msra.mxu0 0.0
  %1927 = vmatpush.msra.mxu0 0.0
  %1928 = vmatpush.msra.mxu0 0.0
  %1929 = vmatpush.msra.mxu0 0.0
  %1930 = vmatpush.msra.mxu0 0.0
  %1931 = vmatpush.msra.mxu0 %v1810
  %1932 = vmatpush.msra.mxu0 %v1806
  %1933 = vmatpush.msra.mxu0 %v1802
  %1934 = vmatpush.msra.mxu0 %v1798
  %1935 = vmatmul.f32.gmra.mxu0 %v1897
  %v1936 = vpop.f32.mrf.mxu0
  %v1937 = vadd.f32 0.0, %v1936
  %1938 = vdwg.mxu0
  %1939 = vmatpush.msra.mxu0 0.0
  %1940 = vmatpush.msra.mxu0 0.0
  %1941 = vmatpush.msra.mxu0 0.0
  %1942 = vmatpush.msra.mxu0 0.0
  %1943 = vmatpush.msra.mxu0 0.0
  %1944 = vmatpush.msra.mxu0 0.0
  %1945 = vmatpush.msra.mxu0 0.0
  %1946 = vmatpush.msra.mxu0 0.0
  %1947 = vmatpush.msra.mxu0 0.0
  %1948 = vmatpush.msra.mxu0 0.0
  %1949 = vmatpush.msra.mxu0 0.0
  %1950 = vmatpush.msra.mxu0 0.0
  %1951 = vmatpush.msra.mxu0 %v1811
  %1952 = vmatpush.msra.mxu0 %v1807
  %1953 = vmatpush.msra.mxu0 %v1803
  %1954 = vmatpush.msra.mxu0 %v1799
  %1955 = vmatmul.f32.gmra.mxu0 %v1897
  %v1956 = vpop.f32.mrf.mxu0
  %v1957 = vadd.f32 0.0, %v1956
  %1958 = vdwg.mxu0
  %1959 = vmatpush.msra.mxu0 0.0
  %1960 = vmatpush.msra.mxu0 0.0
  %1961 = vmatpush.msra.mxu0 0.0
  %1962 = vmatpush.msra.mxu0 0.0
  %1963 = vmatpush.msra.mxu0 0.0
  %1964 = vmatpush.msra.mxu0 0.0
  %1965 = vmatpush.msra.mxu0 0.0
  %1966 = vmatpush.msra.mxu0 0.0
  %1967 = vmatpush.msra.mxu0 0.0
  %1968 = vmatpush.msra.mxu0 0.0
  %1969 = vmatpush.msra.mxu0 0.0
  %1970 = vmatpush.msra.mxu0 0.0
  %1971 = vmatpush.msra.mxu0 %v1812
  %1972 = vmatpush.msra.mxu0 %v1808
  %1973 = vmatpush.msra.mxu0 %v1804
  %1974 = vmatpush.msra.mxu0 %v1800
  %1975 = vmatmul.f32.gmra.mxu0 %v1897
  %v1976 = vpop.f32.mrf.mxu0
  %v1977 = vadd.f32 0.0, %v1976
  %1978 = vdwg.mxu0
  %v1979 = vperm.slane %v1834, 0
  %v1980 = vperm.slane %v1854, 0
  %v1981 = vperm.slane %v1874, 0
  %v1982 = vperm.slane %v1894, 0
  %v1983 = vmul.f32 %v1311, %v1979
  %v1984 = vmul.f32 %v1330, %v1980
  %v1985 = vmul.f32 %v1349, %v1981
  %v1986 = vmul.f32 %v1368, %v1982
  %v1987 = vmul.f32 %v1313, %v1979
  %v1988 = vmul.f32 %v1332, %v1980
  %v1989 = vmul.f32 %v1351, %v1981
  %v1990 = vmul.f32 %v1370, %v1982
  %v1991 = vmul.f32 %v1316, %v1979
  %v1992 = vmul.f32 %v1335, %v1980
  %v1993 = vmul.f32 %v1354, %v1981
  %v1994 = vmul.f32 %v1373, %v1982
  %v1995 = vmul.f32 %v1318, %v1979
  %v1996 = vmul.f32 %v1337, %v1980
  %v1997 = vmul.f32 %v1356, %v1981
  %v1998 = vmul.f32 %v1375, %v1982
  %v1999 = vperm.slane %v1917, 0
  %v2000 = vperm.slane %v1937, 0
  %v2001 = vperm.slane %v1957, 0
  %v2002 = vperm.slane %v1977, 0
  %v2003 = vadd.f32 %v1983, %v1999
  %v2004 = vadd.f32 %v1984, %v2000
  %v2005 = vadd.f32 %v1985, %v2001
  %v2006 = vadd.f32 %v1986, %v2002
  %v2007 = vadd.f32 %v1987, %v1999
  %v2008 = vadd.f32 %v1988, %v2000
  %v2009 = vadd.f32 %v1989, %v2001
  %v2010 = vadd.f32 %v1990, %v2002
  %v2011 = vadd.f32 %v1991, %v1999
  %v2012 = vadd.f32 %v1992, %v2000
  %v2013 = vadd.f32 %v1993, %v2001
  %v2014 = vadd.f32 %v1994, %v2002
  %v2015 = vadd.f32 %v1995, %v1999
  %v2016 = vadd.f32 %v1996, %v2000
  %v2017 = vadd.f32 %v1997, %v2001
  %v2018 = vadd.f32 %v1998, %v2002
  %v2019 = vld [vmem:[%s1] sm:$0xff]
  %v2020 = vld [vmem:[%s1 + $0x8] sm:$0xff]
  %v2021 = vld [vmem:[%s1 + $0x10] sm:$0xff]
  %v2022 = vld [vmem:[%s1 + $0x18] sm:$0xff]
  %v2023 = vld [vmem:[%s1 + $0x20] sm:$0xff]
  %v2024 = vld [vmem:[%s1 + $0x28] sm:$0xff]
  %v2025 = vld [vmem:[%s1 + $0x30] sm:$0xff]
  %v2026 = vld [vmem:[%s1 + $0x38] sm:$0xff]
  %v2027 = vld [vmem:[%s1 + $0x40] sm:$0xff]
  %v2028 = vld [vmem:[%s1 + $0x48] sm:$0xff]
  %v2029 = vld [vmem:[%s1 + $0x50] sm:$0xff]
  %v2030 = vld [vmem:[%s1 + $0x58] sm:$0xff]
  %v2031 = vld [vmem:[%s1 + $0x60] sm:$0xff]
  %v2032 = vld [vmem:[%s1 + $0x68] sm:$0xff]
  %v2033 = vld [vmem:[%s1 + $0x70] sm:$0xff]
  %v2034 = vld [vmem:[%s1 + $0x78] sm:$0xff]
  %v2035 = vadd.f32 %v2003, %v2019
  %v2036 = vadd.f32 %v2004, %v2020
  %v2037 = vadd.f32 %v2005, %v2021
  %v2038 = vadd.f32 %v2006, %v2022
  %v2039 = vadd.f32 %v2007, %v2023
  %v2040 = vadd.f32 %v2008, %v2024
  %v2041 = vadd.f32 %v2009, %v2025
  %v2042 = vadd.f32 %v2010, %v2026
  %v2043 = vadd.f32 %v2011, %v2027
  %v2044 = vadd.f32 %v2012, %v2028
  %v2045 = vadd.f32 %v2013, %v2029
  %v2046 = vadd.f32 %v2014, %v2030
  %v2047 = vadd.f32 %v2015, %v2031
  %v2048 = vadd.f32 %v2016, %v2032
  %v2049 = vadd.f32 %v2017, %v2033
  %v2050 = vadd.f32 %v2018, %v2034
  %v2051 = vmax.f32 %v2035, 0.0
  %v2052 = vmax.f32 %v2036, 0.0
  %v2053 = vmax.f32 %v2037, 0.0
  %v2054 = vmax.f32 %v2038, 0.0
  %v2055 = vmax.f32 %v2039, 0.0
  %v2056 = vmax.f32 %v2040, 0.0
  %v2057 = vmax.f32 %v2041, 0.0
  %v2058 = vmax.f32 %v2042, 0.0
  %v2059 = vmax.f32 %v2043, 0.0
  %v2060 = vmax.f32 %v2044, 0.0
  %v2061 = vmax.f32 %v2045, 0.0
  %v2062 = vmax.f32 %v2046, 0.0
  %v2063 = vmax.f32 %v2047, 0.0
  %v2064 = vmax.f32 %v2048, 0.0
  %v2065 = vmax.f32 %v2049, 0.0
  %v2066 = vmax.f32 %v2050, 0.0
  %2067 = vst [vmem:[%s15] sm:$0xff] %v2051
  %2068 = vst [vmem:[%s15 + $0x8] sm:$0xff] %v2052
  %2069 = vst [vmem:[%s15 + $0x10] sm:$0xff] %v2053
  %2070 = vst [vmem:[%s15 + $0x18] sm:$0xff] %v2054
  %2071 = vst [vmem:[%s15 + $0x20] sm:$0xff] %v2055
  %2072 = vst [vmem:[%s15 + $0x28] sm:$0xff] %v2056
  %2073 = vst [vmem:[%s15 + $0x30] sm:$0xff] %v2057
  %2074 = vst [vmem:[%s15 + $0x38] sm:$0xff] %v2058
  %2075 = vst [vmem:[%s15 + $0x40] sm:$0xff] %v2059
  %2076 = vst [vmem:[%s15 + $0x48] sm:$0xff] %v2060
  %2077 = vst [vmem:[%s15 + $0x50] sm:$0xff] %v2061
  %2078 = vst [vmem:[%s15 + $0x58] sm:$0xff] %v2062
  %2079 = vst [vmem:[%s15 + $0x60] sm:$0xff] %v2063
  %2080 = vst [vmem:[%s15 + $0x68] sm:$0xff] %v2064
  %2081 = vst [vmem:[%s15 + $0x70] sm:$0xff] %v2065
  %2082 = vst [vmem:[%s15 + $0x78] sm:$0xff] %v2066
  // Predicated region
  $region62: #{bottleneck_forward.1} parent=0 // pred_check
    _
  $region63: #{bottleneck_forward.1} parent=0 // pred_check_branch
    %2084 = sbr.rel (0) target = $region65
  $region64: #{bottleneck_forward.1} parent=0 // pred_region
    _
  $region65: #{bottleneck_forward.1} parent=0 // pred_fallthru
    _
  // Predicated region
  $region66: #{bottleneck_forward.1} parent=0 // pred_check
    _
  $region67: #{bottleneck_forward.1} parent=0 // pred_check_branch
    %2086 = sbr.rel (0) target = $region69
  $region68: #{bottleneck_forward.1} parent=0 // pred_region
    _
  $region69: #{bottleneck_forward.1} parent=0 // pred_fallthru
    _

</llo_original>
